<compile_context>
chip_gen: v7x
topology: tpu7x:2x2x1
jax: 0.10.0
libtpu: 0.0.40
codegen_flags: <defaults>
</compile_context>

<pallas_src>
import math

import jax
import jax.numpy as jnp
from jax.experimental import pallas as pl
from jax.experimental.pallas import tpu as pltpu


_LANE_W = 1024       # lane-dense last dim (multiple of 128) -> unmasked vst
_MAX_TILE_R = 512    # 512*1024*4B = 2 MiB per output tile


def _c32(c):
    """Python int -> int32 constant with two's-complement wrap (hash constants)."""
    c &= 0xFFFFFFFF
    if c >= 1 << 31:
        c -= 1 << 32
    return jnp.int32(c)


def _mix32(x):
    """lowbias32-style integer finalizer on int32 (wrapping arithmetic)."""
    x = x ^ jnp.right_shift(x, 16)
    x = x * _c32(0x7FEB352D)
    x = x ^ jnp.right_shift(x, 15)
    x = x * _c32(0x846CA68B)
    x = x ^ jnp.right_shift(x, 16)
    return x


def _randn_kernel(seed_ref, out_ref):
    """Fill one (TILE_R, LANE_W) tile with i.i.d. standard normal samples."""
    tile_r, lane_w = out_ref.shape
    half_r = tile_r // 2

    pid = pl.program_id(0)
    seed = seed_ref[0]

    # Globally-unique pair counter: unique per (block, row, col), so per-block
    # streams never collide and the v7x two-core split stays correct.
    row = jax.lax.broadcasted_iota(jnp.int32, (half_r, lane_w), 0)
    col = jax.lax.broadcasted_iota(jnp.int32, (half_r, lane_w), 1)
    pair = (pid * half_r + row) * lane_w + col

    # Mix the user seed in with a golden-ratio odd constant, then derive two
    # decorrelated 32-bit streams per pair.
    base = pair * 2 + seed * _c32(0x9E3779B9)
    b1 = _mix32(base)
    b2 = _mix32(base + 1)

    # Low 24 bits -> uniforms: u1 in (0, 1] (log never sees 0), u2 in [0, 1).
    mask24 = jnp.int32(0x00FFFFFF)
    inv24 = jnp.float32(1.0 / 16777216.0)
    u1 = ((b1 & mask24).astype(jnp.float32) + 1.0) * inv24
    u2 = (b2 & mask24).astype(jnp.float32) * inv24

    # Box-Muller, both branches used (EUP: one log/sqrt/cos/sin set -> 2 outputs).
    r = jnp.sqrt(-2.0 * jnp.log(u1))
    theta = jnp.float32(2.0 * math.pi) * u2
    out_ref[0:half_r, :] = (r * jnp.cos(theta)).astype(out_ref.dtype)
    out_ref[half_r:, :] = (r * jnp.sin(theta)).astype(out_ref.dtype)


def diffusion_model_forward(x, t, *, seed=0):
    """Pallas equivalent of diffusion_model.forward(x, t) == torch.randn_like(x)."""
    del t  # unused, matching the reference module
    orig_shape = x.shape
    total = 1
    for d in orig_shape:
        total *= int(d)

    rows = -(-total // _LANE_W)
    # Tile rows: multiple of 16 so each Box-Muller half is sublane-aligned.
    tile_r = min(_MAX_TILE_R, -(-rows // 16) * 16)
    padded_rows = -(-rows // tile_r) * tile_r
    grid = (padded_rows // tile_r,)

    seed_arr = jnp.array([seed], dtype=jnp.int32)

    out_flat = pl.pallas_call(
        _randn_kernel,
        out_shape=jax.ShapeDtypeStruct((padded_rows, _LANE_W), x.dtype),
        grid=grid,
        in_specs=[pl.BlockSpec(memory_space=pltpu.MemorySpace.SMEM)],
        out_specs=pl.BlockSpec((tile_r, _LANE_W), lambda i: (i, 0)),
        compiler_params=pltpu.CompilerParams(
            dimension_semantics=("parallel",)),
    )(seed_arr)

    return out_flat.reshape(-1)[:total].reshape(orig_shape)


if __name__ == "__main__":
    key = jax.random.PRNGKey(0)
    kx, kt = jax.random.split(key)

    # Small NCHW input consistent with a diffusion forward: (B, C, H, W).
    x = jax.random.normal(kx, (2, 4, 16, 16), dtype=jnp.float32)
    # Timestep tensor (unused by the forward, present for signature parity).
    t = jax.random.randint(kt, (2,), 0, 1000)

    out = diffusion_model_forward(x, t, seed=0)
    out = jax.block_until_ready(out)

    assert out.shape == x.shape and out.dtype == x.dtype
    assert bool(jnp.all(jnp.isfinite(out)))
    mean = float(jnp.mean(out))
    std = float(jnp.std(out))
    assert abs(mean) < 0.25 and 0.5 < std < 1.5, (mean, std)
    print("KERNEL_OK")
</pallas_src>

<mosaic_0001>
module attributes {stable_mosaic.version = 11 : i64} {
  func.func @_randn_kernel(%arg0: i32, %arg1: memref<1xi32, #tpu.memory_space<smem>>, %arg2: memref<16x1024xf32, #tpu.memory_space<vmem>>) attributes {dimension_semantics = [#tpu.dimension_semantics<parallel>], iteration_bounds = array<i64: 1>, scalar_prefetch = 0 : i64, scratch_operands = 0 : i64, tpu.core_type = #tpu.core_type<tc>, window_params = [{transform_indices = @transform_0, window_bounds = array<i64: 1>}, {transform_indices = @transform_1, window_bounds = array<i64: 16, 1024>}]} {
    %c0 = arith.constant 0 : index
    %0 = memref.load %arg1[%c0] : memref<1xi32, #tpu.memory_space<smem>>
    %1 = tpu.iota {dimensions = array<i32: 0>} : vector<8x1024xi32>
    %2 = tpu.iota {dimensions = array<i32: 1>} : vector<8x1024xi32>
    %c8_i32 = arith.constant 8 : i32
    %3 = arith.muli %arg0, %c8_i32 : i32
    %4 = vector.broadcast %3 : i32 to vector<8x1024xi32>
    %5 = arith.addi %4, %1 : vector<8x1024xi32>
    %c1024_i32 = arith.constant 1024 : i32
    %6 = vector.broadcast %c1024_i32 : i32 to vector<8x1024xi32>
    %7 = arith.muli %5, %6 : vector<8x1024xi32>
    %8 = arith.addi %7, %2 : vector<8x1024xi32>
    %c2_i32 = arith.constant 2 : i32
    %9 = vector.broadcast %c2_i32 : i32 to vector<8x1024xi32>
    %10 = arith.muli %8, %9 : vector<8x1024xi32>
    %c-1640531527_i32 = arith.constant -1640531527 : i32
    %11 = arith.muli %0, %c-1640531527_i32 : i32
    %12 = vector.broadcast %11 : i32 to vector<8x1024xi32>
    %13 = arith.addi %10, %12 : vector<8x1024xi32>
    %c16_i32 = arith.constant 16 : i32
    %14 = vector.broadcast %c16_i32 : i32 to vector<8x1024xi32>
    %15 = arith.shrsi %13, %14 : vector<8x1024xi32>
    %16 = arith.xori %13, %15 : vector<8x1024xi32>
    %c2146121005_i32 = arith.constant 2146121005 : i32
    %17 = vector.broadcast %c2146121005_i32 : i32 to vector<8x1024xi32>
    %18 = arith.muli %16, %17 : vector<8x1024xi32>
    %c15_i32 = arith.constant 15 : i32
    %19 = vector.broadcast %c15_i32 : i32 to vector<8x1024xi32>
    %20 = arith.shrsi %18, %19 : vector<8x1024xi32>
    %21 = arith.xori %18, %20 : vector<8x1024xi32>
    %c-2073254261_i32 = arith.constant -2073254261 : i32
    %22 = vector.broadcast %c-2073254261_i32 : i32 to vector<8x1024xi32>
    %23 = arith.muli %21, %22 : vector<8x1024xi32>
    %c16_i32_0 = arith.constant 16 : i32
    %24 = vector.broadcast %c16_i32_0 : i32 to vector<8x1024xi32>
    %25 = arith.shrsi %23, %24 : vector<8x1024xi32>
    %26 = arith.xori %23, %25 : vector<8x1024xi32>
    %c1_i32 = arith.constant 1 : i32
    %27 = vector.broadcast %c1_i32 : i32 to vector<8x1024xi32>
    %28 = arith.addi %13, %27 : vector<8x1024xi32>
    %c16_i32_1 = arith.constant 16 : i32
    %29 = vector.broadcast %c16_i32_1 : i32 to vector<8x1024xi32>
    %30 = arith.shrsi %28, %29 : vector<8x1024xi32>
    %31 = arith.xori %28, %30 : vector<8x1024xi32>
    %c2146121005_i32_2 = arith.constant 2146121005 : i32
    %32 = vector.broadcast %c2146121005_i32_2 : i32 to vector<8x1024xi32>
    %33 = arith.muli %31, %32 : vector<8x1024xi32>
    %c15_i32_3 = arith.constant 15 : i32
    %34 = vector.broadcast %c15_i32_3 : i32 to vector<8x1024xi32>
    %35 = arith.shrsi %33, %34 : vector<8x1024xi32>
    %36 = arith.xori %33, %35 : vector<8x1024xi32>
    %c-2073254261_i32_4 = arith.constant -2073254261 : i32
    %37 = vector.broadcast %c-2073254261_i32_4 : i32 to vector<8x1024xi32>
    %38 = arith.muli %36, %37 : vector<8x1024xi32>
    %c16_i32_5 = arith.constant 16 : i32
    %39 = vector.broadcast %c16_i32_5 : i32 to vector<8x1024xi32>
    %40 = arith.shrsi %38, %39 : vector<8x1024xi32>
    %41 = arith.xori %38, %40 : vector<8x1024xi32>
    %c16777215_i32 = arith.constant 16777215 : i32
    %42 = vector.broadcast %c16777215_i32 : i32 to vector<8x1024xi32>
    %43 = arith.andi %26, %42 : vector<8x1024xi32>
    %44 = arith.sitofp %43 : vector<8x1024xi32> to vector<8x1024xf32>
    %cst = arith.constant 1.000000e+00 : f32
    %45 = vector.broadcast %cst : f32 to vector<8x1024xf32>
    %46 = arith.addf %44, %45 : vector<8x1024xf32>
    %cst_6 = arith.constant 5.96046448E-8 : f32
    %47 = vector.broadcast %cst_6 : f32 to vector<8x1024xf32>
    %48 = arith.mulf %46, %47 : vector<8x1024xf32>
    %c16777215_i32_7 = arith.constant 16777215 : i32
    %49 = vector.broadcast %c16777215_i32_7 : i32 to vector<8x1024xi32>
    %50 = arith.andi %41, %49 : vector<8x1024xi32>
    %51 = arith.sitofp %50 : vector<8x1024xi32> to vector<8x1024xf32>
    %cst_8 = arith.constant 5.96046448E-8 : f32
    %52 = vector.broadcast %cst_8 : f32 to vector<8x1024xf32>
    %53 = arith.mulf %51, %52 : vector<8x1024xf32>
    %54 = math.log %48 : vector<8x1024xf32>
    %cst_9 = arith.constant -2.000000e+00 : f32
    %55 = vector.broadcast %cst_9 : f32 to vector<8x1024xf32>
    %56 = arith.mulf %55, %54 : vector<8x1024xf32>
    %57 = math.sqrt %56 : vector<8x1024xf32>
    %cst_10 = arith.constant 6.28318548 : f32
    %58 = vector.broadcast %cst_10 : f32 to vector<8x1024xf32>
    %59 = arith.mulf %58, %53 : vector<8x1024xf32>
    %60 = math.cos %59 : vector<8x1024xf32>
    %61 = arith.mulf %57, %60 : vector<8x1024xf32>
    %c0_11 = arith.constant 0 : index
    %c0_12 = arith.constant 0 : index
    %62 = vector.load %arg2[%c0_11, %c0_12] : memref<16x1024xf32, #tpu.memory_space<vmem>>, vector<8x1024xf32>
    tpu.vector_store %arg2[%c0_11, %c0_12], %61 {strides = array<i32>} : memref<16x1024xf32, #tpu.memory_space<vmem>>, vector<8x1024xf32>,
    %63 = math.sin %59 : vector<8x1024xf32>
    %64 = arith.mulf %57, %63 : vector<8x1024xf32>
    %c8 = arith.constant 8 : index
    %c0_13 = arith.constant 0 : index
    %65 = vector.load %arg2[%c8, %c0_13] : memref<16x1024xf32, #tpu.memory_space<vmem>>, vector<8x1024xf32>
    tpu.vector_store %arg2[%c8, %c0_13], %64 {strides = array<i32>} : memref<16x1024xf32, #tpu.memory_space<vmem>>, vector<8x1024xf32>,
    return
  }
  func.func @transform_0(%arg0: i32) -> i32 {
    %c0_i32 = arith.constant 0 : i32
    %c0_i32_0 = arith.constant 0 : i32
    return %c0_i32 : i32
  }
  func.func @transform_1(%arg0: i32) -> (i32, i32) {
    %c0_i32 = arith.constant 0 : i32
    %c0_i32_0 = arith.constant 0 : i32
    return %arg0, %c0_i32 : i32, i32
  }
}

</mosaic_0001>

<llo_original>
// kernel: tpu_custom_call.1
$region0: #{tpu_custom_call.1}
  #allocation0 [shape = 'u32[]', space=smem, size = 0x4, offset = 0x4, fixed_abs, tag = 'smem constant byte address 0x4 - core index']
  #allocation1 [shape = 'u32[144,128]{1,0:T(1,128)}', space=vmem, size = 0x12000, scoped, tag = 'internal scratch']
  #allocation2 [shape = 's32[1]{0:T(128)S(6)}', space=smem, size = 0x200, scoped, tag = 'scoped memory for tpu_custom_call.1']
  %s0 = inlined_call_operand.<no memory space> [shape: s32[1], index: 0, kind: input, shape index: {}]
  %s1 = inlined_call_operand.hbm [shape: f32[16,1024], index: 1, kind: output, shape index: {}]
  %s2 = sld [smem:[#allocation0]]
  $region14: #{tpu_custom_call.1} parent=0
    _
  %s4 = ssub.s32 1, %s2
  %s5 = scalar_select 0, %s4, %s2
  %6 = sst [smem:[#allocation2]] %s0
  $region1: #{tpu_custom_call.1} parent=0
    #allocation3 [shape = 'u8[65536]{0}', space=vmem, size = 0x10000, scoped, tag = 'output window, operand 0, single buffered']
    #allocation4 [shape = 's32[1]{0}', space=sflag, size = 0x4, scoped, tag = 'scoped memory for tpu_custom_call.1']
    %7 = vsyncpa [#allocation4], 0
    // Predicated region
    $region2: #{tpu_custom_call.1} parent=1 // pred_check
      _
    $region3: #{tpu_custom_call.1} parent=1 // pred_check_branch
      %9 = sbr.rel (0) target = $region5
    $region4: #{tpu_custom_call.1} parent=1 // pred_region
      _
    $region5: #{tpu_custom_call.1} parent=1 // pred_fallthru
      _
    %s10 = sld [smem:[#allocation2]]
    %v11 = vlaneseq
    %v12 = vshrl.u32 %v11, 7
    %v13 = vlaneseq
    %v14 = vand.u32 %v13, 127
    %v15 = vadd.s32 %v14, 128
    %v16 = vadd.s32 %v14, 256
    %v17 = vadd.s32 %v14, 384
    %v18 = vadd.s32 %v14, 512
    %v19 = vadd.s32 %v14, 640
    %v20 = vadd.s32 %v14, 768
    %v21 = vadd.s32 %v14, 896
    %s22 = smul.u32 0, 8
    %v23 = vstv %s22
    %v24 = vadd.s32 %v23, %v12
    %v25 = vmul.u32 %v24, 1024
    %v26 = vadd.s32 %v25, %v14
    %v27 = vadd.s32 %v25, %v15
    %v28 = vadd.s32 %v25, %v16
    %v29 = vadd.s32 %v25, %v17
    %v30 = vadd.s32 %v25, %v18
    %v31 = vadd.s32 %v25, %v19
    %v32 = vadd.s32 %v25, %v20
    %v33 = vadd.s32 %v25, %v21
    %v34 = vmul.u32 %v26, 2
    %v35 = vmul.u32 %v27, 2
    %v36 = vmul.u32 %v28, 2
    %v37 = vmul.u32 %v29, 2
    %v38 = vmul.u32 %v30, 2
    %v39 = vmul.u32 %v31, 2
    %v40 = vmul.u32 %v32, 2
    %v41 = vmul.u32 %v33, 2
    %s42 = smul.u32 %s10, 2654435769
    %v43 = vstv %s42
    %v44 = vadd.s32 %v34, %v43
    %v45 = vadd.s32 %v35, %v43
    %v46 = vadd.s32 %v36, %v43
    %v47 = vadd.s32 %v37, %v43
    %v48 = vadd.s32 %v38, %v43
    %v49 = vadd.s32 %v39, %v43
    %v50 = vadd.s32 %v40, %v43
    %v51 = vadd.s32 %v41, %v43
    %v52 = vshra.s32 %v44, 16
    %v53 = vshra.s32 %v45, 16
    %v54 = vshra.s32 %v46, 16
    %v55 = vshra.s32 %v47, 16
    %v56 = vshra.s32 %v48, 16
    %v57 = vshra.s32 %v49, 16
    %v58 = vshra.s32 %v50, 16
    %v59 = vshra.s32 %v51, 16
    %v60 = vxor.u32 %v44, %v52
    %v61 = vxor.u32 %v45, %v53
    %v62 = vxor.u32 %v46, %v54
    %v63 = vxor.u32 %v47, %v55
    %v64 = vxor.u32 %v48, %v56
    %v65 = vxor.u32 %v49, %v57
    %v66 = vxor.u32 %v50, %v58
    %v67 = vxor.u32 %v51, %v59
    %v68 = vmul.u32 %v60, 2146121005
    %v69 = vmul.u32 %v61, 2146121005
    %v70 = vmul.u32 %v62, 2146121005
    %v71 = vmul.u32 %v63, 2146121005
    %v72 = vmul.u32 %v64, 2146121005
    %v73 = vmul.u32 %v65, 2146121005
    %v74 = vmul.u32 %v66, 2146121005
    %v75 = vmul.u32 %v67, 2146121005
    %v76 = vshra.s32 %v68, 15
    %v77 = vshra.s32 %v69, 15
    %v78 = vshra.s32 %v70, 15
    %v79 = vshra.s32 %v71, 15
    %v80 = vshra.s32 %v72, 15
    %v81 = vshra.s32 %v73, 15
    %v82 = vshra.s32 %v74, 15
    %v83 = vshra.s32 %v75, 15
    %v84 = vxor.u32 %v68, %v76
    %v85 = vxor.u32 %v69, %v77
    %v86 = vxor.u32 %v70, %v78
    %v87 = vxor.u32 %v71, %v79
    %v88 = vxor.u32 %v72, %v80
    %v89 = vxor.u32 %v73, %v81
    %v90 = vxor.u32 %v74, %v82
    %v91 = vxor.u32 %v75, %v83
    %v92 = vmul.u32 %v84, 2221713035
    %v93 = vmul.u32 %v85, 2221713035
    %v94 = vmul.u32 %v86, 2221713035
    %v95 = vmul.u32 %v87, 2221713035
    %v96 = vmul.u32 %v88, 2221713035
    %v97 = vmul.u32 %v89, 2221713035
    %v98 = vmul.u32 %v90, 2221713035
    %v99 = vmul.u32 %v91, 2221713035
    %v100 = vshra.s32 %v92, 16
    %v101 = vshra.s32 %v93, 16
    %v102 = vshra.s32 %v94, 16
    %v103 = vshra.s32 %v95, 16
    %v104 = vshra.s32 %v96, 16
    %v105 = vshra.s32 %v97, 16
    %v106 = vshra.s32 %v98, 16
    %v107 = vshra.s32 %v99, 16
    %v108 = vxor.u32 %v92, %v100
    %v109 = vxor.u32 %v93, %v101
    %v110 = vxor.u32 %v94, %v102
    %v111 = vxor.u32 %v95, %v103
    %v112 = vxor.u32 %v96, %v104
    %v113 = vxor.u32 %v97, %v105
    %v114 = vxor.u32 %v98, %v106
    %v115 = vxor.u32 %v99, %v107
    %v116 = vadd.s32 %v44, 1
    %v117 = vadd.s32 %v45, 1
    %v118 = vadd.s32 %v46, 1
    %v119 = vadd.s32 %v47, 1
    %v120 = vadd.s32 %v48, 1
    %v121 = vadd.s32 %v49, 1
    %v122 = vadd.s32 %v50, 1
    %v123 = vadd.s32 %v51, 1
    %v124 = vshra.s32 %v116, 16
    %v125 = vshra.s32 %v117, 16
    %v126 = vshra.s32 %v118, 16
    %v127 = vshra.s32 %v119, 16
    %v128 = vshra.s32 %v120, 16
    %v129 = vshra.s32 %v121, 16
    %v130 = vshra.s32 %v122, 16
    %v131 = vshra.s32 %v123, 16
    %v132 = vxor.u32 %v116, %v124
    %v133 = vxor.u32 %v117, %v125
    %v134 = vxor.u32 %v118, %v126
    %v135 = vxor.u32 %v119, %v127
    %v136 = vxor.u32 %v120, %v128
    %v137 = vxor.u32 %v121, %v129
    %v138 = vxor.u32 %v122, %v130
    %v139 = vxor.u32 %v123, %v131
    %v140 = vmul.u32 %v132, 2146121005
    %v141 = vmul.u32 %v133, 2146121005
    %v142 = vmul.u32 %v134, 2146121005
    %v143 = vmul.u32 %v135, 2146121005
    %v144 = vmul.u32 %v136, 2146121005
    %v145 = vmul.u32 %v137, 2146121005
    %v146 = vmul.u32 %v138, 2146121005
    %v147 = vmul.u32 %v139, 2146121005
    %v148 = vshra.s32 %v140, 15
    %v149 = vshra.s32 %v141, 15
    %v150 = vshra.s32 %v142, 15
    %v151 = vshra.s32 %v143, 15
    %v152 = vshra.s32 %v144, 15
    %v153 = vshra.s32 %v145, 15
    %v154 = vshra.s32 %v146, 15
    %v155 = vshra.s32 %v147, 15
    %v156 = vxor.u32 %v140, %v148
    %v157 = vxor.u32 %v141, %v149
    %v158 = vxor.u32 %v142, %v150
    %v159 = vxor.u32 %v143, %v151
    %v160 = vxor.u32 %v144, %v152
    %v161 = vxor.u32 %v145, %v153
    %v162 = vxor.u32 %v146, %v154
    %v163 = vxor.u32 %v147, %v155
    %v164 = vmul.u32 %v156, 2221713035
    %v165 = vmul.u32 %v157, 2221713035
    %v166 = vmul.u32 %v158, 2221713035
    %v167 = vmul.u32 %v159, 2221713035
    %v168 = vmul.u32 %v160, 2221713035
    %v169 = vmul.u32 %v161, 2221713035
    %v170 = vmul.u32 %v162, 2221713035
    %v171 = vmul.u32 %v163, 2221713035
    %v172 = vshra.s32 %v164, 16
    %v173 = vshra.s32 %v165, 16
    %v174 = vshra.s32 %v166, 16
    %v175 = vshra.s32 %v167, 16
    %v176 = vshra.s32 %v168, 16
    %v177 = vshra.s32 %v169, 16
    %v178 = vshra.s32 %v170, 16
    %v179 = vshra.s32 %v171, 16
    %v180 = vxor.u32 %v164, %v172
    %v181 = vxor.u32 %v165, %v173
    %v182 = vxor.u32 %v166, %v174
    %v183 = vxor.u32 %v167, %v175
    %v184 = vxor.u32 %v168, %v176
    %v185 = vxor.u32 %v169, %v177
    %v186 = vxor.u32 %v170, %v178
    %v187 = vxor.u32 %v171, %v179
    %v188 = vand.u32 %v108, 16777215
    %v189 = vand.u32 %v109, 16777215
    %v190 = vand.u32 %v110, 16777215
    %v191 = vand.u32 %v111, 16777215
    %v192 = vand.u32 %v112, 16777215
    %v193 = vand.u32 %v113, 16777215
    %v194 = vand.u32 %v114, 16777215
    %v195 = vand.u32 %v115, 16777215
    %v196 = vcvt.s32.f32 %v188
    %v197 = vcvt.s32.f32 %v189
    %v198 = vcvt.s32.f32 %v190
    %v199 = vcvt.s32.f32 %v191
    %v200 = vcvt.s32.f32 %v192
    %v201 = vcvt.s32.f32 %v193
    %v202 = vcvt.s32.f32 %v194
    %v203 = vcvt.s32.f32 %v195
    %v204 = vadd.f32 %v196, 1.0
    %v205 = vadd.f32 %v197, 1.0
    %v206 = vadd.f32 %v198, 1.0
    %v207 = vadd.f32 %v199, 1.0
    %v208 = vadd.f32 %v200, 1.0
    %v209 = vadd.f32 %v201, 1.0
    %v210 = vadd.f32 %v202, 1.0
    %v211 = vadd.f32 %v203, 1.0
    %v212 = vmul.f32 %v204, 5.9604645e-08
    %v213 = vmul.f32 %v205, 5.9604645e-08
    %v214 = vmul.f32 %v206, 5.9604645e-08
    %v215 = vmul.f32 %v207, 5.9604645e-08
    %v216 = vmul.f32 %v208, 5.9604645e-08
    %v217 = vmul.f32 %v209, 5.9604645e-08
    %v218 = vmul.f32 %v210, 5.9604645e-08
    %v219 = vmul.f32 %v211, 5.9604645e-08
    %v220 = vand.u32 %v180, 16777215
    %v221 = vand.u32 %v181, 16777215
    %v222 = vand.u32 %v182, 16777215
    %v223 = vand.u32 %v183, 16777215
    %v224 = vand.u32 %v184, 16777215
    %v225 = vand.u32 %v185, 16777215
    %v226 = vand.u32 %v186, 16777215
    %v227 = vand.u32 %v187, 16777215
    %v228 = vcvt.s32.f32 %v220
    %v229 = vcvt.s32.f32 %v221
    %v230 = vcvt.s32.f32 %v222
    %v231 = vcvt.s32.f32 %v223
    %v232 = vcvt.s32.f32 %v224
    %v233 = vcvt.s32.f32 %v225
    %v234 = vcvt.s32.f32 %v226
    %v235 = vcvt.s32.f32 %v227
    %v236 = vmul.f32 %v228, 5.9604645e-08
    %v237 = vmul.f32 %v229, 5.9604645e-08
    %v238 = vmul.f32 %v230, 5.9604645e-08
    %v239 = vmul.f32 %v231, 5.9604645e-08
    %v240 = vmul.f32 %v232, 5.9604645e-08
    %v241 = vmul.f32 %v233, 5.9604645e-08
    %v242 = vmul.f32 %v234, 5.9604645e-08
    %v243 = vmul.f32 %v235, 5.9604645e-08
    %v244 = vlog2.pop %v212
    %v245 = vmul.f32 %v244, 0.6931472
    %v246 = vlog2.pop %v213
    %v247 = vmul.f32 %v246, 0.6931472
    %v248 = vlog2.pop %v214
    %v249 = vmul.f32 %v248, 0.6931472
    %v250 = vlog2.pop %v215
    %v251 = vmul.f32 %v250, 0.6931472
    %v252 = vlog2.pop %v216
    %v253 = vmul.f32 %v252, 0.6931472
    %v254 = vlog2.pop %v217
    %v255 = vmul.f32 %v254, 0.6931472
    %v256 = vlog2.pop %v218
    %v257 = vmul.f32 %v256, 0.6931472
    %v258 = vlog2.pop %v219
    %v259 = vmul.f32 %v258, 0.6931472
    %v260 = vmul.f32 %v245, -2.0
    %v261 = vmul.f32 %v247, -2.0
    %v262 = vmul.f32 %v249, -2.0
    %v263 = vmul.f32 %v251, -2.0
    %v264 = vmul.f32 %v253, -2.0
    %v265 = vmul.f32 %v255, -2.0
    %v266 = vmul.f32 %v257, -2.0
    %v267 = vmul.f32 %v259, -2.0
    %v268 = vrsqrt.pop %v260
    %v269 = vmul.f32 %v260, %v268
    %vm270 = vcmp.eq.f32.partialorder %v260, inf
    %v271 = vsel %vm270, %v260, %v269
    %vm272 = vcmp.eq.f32.partialorder %v260, 0.0
    %v273 = vand.u32 %v260, 2147483648
    %v274 = vsel %vm272, %v273, %v271
    %v275 = vrsqrt.pop %v261
    %v276 = vmul.f32 %v261, %v275
    %vm277 = vcmp.eq.f32.partialorder %v261, inf
    %v278 = vsel %vm277, %v261, %v276
    %vm279 = vcmp.eq.f32.partialorder %v261, 0.0
    %v280 = vand.u32 %v261, 2147483648
    %v281 = vsel %vm279, %v280, %v278
    %v282 = vrsqrt.pop %v262
    %v283 = vmul.f32 %v262, %v282
    %vm284 = vcmp.eq.f32.partialorder %v262, inf
    %v285 = vsel %vm284, %v262, %v283
    %vm286 = vcmp.eq.f32.partialorder %v262, 0.0
    %v287 = vand.u32 %v262, 2147483648
    %v288 = vsel %vm286, %v287, %v285
    %v289 = vrsqrt.pop %v263
    %v290 = vmul.f32 %v263, %v289
    %vm291 = vcmp.eq.f32.partialorder %v263, inf
    %v292 = vsel %vm291, %v263, %v290
    %vm293 = vcmp.eq.f32.partialorder %v263, 0.0
    %v294 = vand.u32 %v263, 2147483648
    %v295 = vsel %vm293, %v294, %v292
    %v296 = vrsqrt.pop %v264
    %v297 = vmul.f32 %v264, %v296
    %vm298 = vcmp.eq.f32.partialorder %v264, inf
    %v299 = vsel %vm298, %v264, %v297
    %vm300 = vcmp.eq.f32.partialorder %v264, 0.0
    %v301 = vand.u32 %v264, 2147483648
    %v302 = vsel %vm300, %v301, %v299
    %v303 = vrsqrt.pop %v265
    %v304 = vmul.f32 %v265, %v303
    %vm305 = vcmp.eq.f32.partialorder %v265, inf
    %v306 = vsel %vm305, %v265, %v304
    %vm307 = vcmp.eq.f32.partialorder %v265, 0.0
    %v308 = vand.u32 %v265, 2147483648
    %v309 = vsel %vm307, %v308, %v306
    %v310 = vrsqrt.pop %v266
    %v311 = vmul.f32 %v266, %v310
    %vm312 = vcmp.eq.f32.partialorder %v266, inf
    %v313 = vsel %vm312, %v266, %v311
    %vm314 = vcmp.eq.f32.partialorder %v266, 0.0
    %v315 = vand.u32 %v266, 2147483648
    %v316 = vsel %vm314, %v315, %v313
    %v317 = vrsqrt.pop %v267
    %v318 = vmul.f32 %v267, %v317
    %vm319 = vcmp.eq.f32.partialorder %v267, inf
    %v320 = vsel %vm319, %v267, %v318
    %vm321 = vcmp.eq.f32.partialorder %v267, 0.0
    %v322 = vand.u32 %v267, 2147483648
    %v323 = vsel %vm321, %v322, %v320
    %v324 = vmul.f32 %v236, 6.2831855
    %v325 = vmul.f32 %v237, 6.2831855
    %v326 = vmul.f32 %v238, 6.2831855
    %v327 = vmul.f32 %v239, 6.2831855
    %v328 = vmul.f32 %v240, 6.2831855
    %v329 = vmul.f32 %v241, 6.2831855
    %v330 = vmul.f32 %v242, 6.2831855
    %v331 = vmul.f32 %v243, 6.2831855
    %v332 = vand.u32 2147483647, %v324
    %vm333 = vcmp.le.f32.partialorder %v332, 0.7853982
    %vm334 = vcmp.lt.s32.totalorder %v324, 0
    %v335 = vand.u32 %v324, 2139095040
    %v336 = vshrl.u32 %v335, 23
    %v337 = vsub.s32 %v336, 127
    %v338 = vand.u32 2147483647, %v324
    %v339 = vand.u32 %v338, 8388607
    %v340 = vor.u32 %v339, 8388608
    %v341 = vsub.s32 0, %v340
    %v342 = vadd.s32 %v337, 1
    %vm343 = vcmp.gt.s32.totalorder %v342, 0
    %v344 = vsel %vm343, %v342, 0
    %v345 = vshrl.u32 %v344, 5
    %v346 = vand.u32 %v344, 31
    %v347 = vsub.s32 32, %v346
    %v348 = vshrl.u32 683565275, %v347
    %v349 = vshll.u32 683565275, %v346
    %v350 = vshrl.u32 2475754826, %v347
    %v351 = vor.u32 %v349, %v350
    %v352 = vshll.u32 2475754826, %v346
    %v353 = vshrl.u32 2131351028, %v347
    %v354 = vor.u32 %v352, %v353
    %v355 = vshll.u32 2131351028, %v346
    %v356 = vshrl.u32 2102212464, %v347
    %v357 = vor.u32 %v355, %v356
    %v358 = vshll.u32 2102212464, %v346
    %v359 = vshrl.u32 920167782, %v347
    %v360 = vor.u32 %v358, %v359
    %v361 = vshll.u32 920167782, %v346
    %v362 = vshrl.u32 1326507024, %v347
    %v363 = vor.u32 %v361, %v362
    %vm364 = vcmp.lt.s32.totalorder %v345, 1
    %vm365 = vcmp.lt.s32.totalorder %v345, 2
    %vm366 = vcmp.lt.s32.totalorder %v345, 3
    %vm367 = vcmp.lt.s32.totalorder %v345, 4
    %v368 = vsel %vm364, %v348, %v351
    %v369 = vsel %vm367, %v357, 2102212464
    %v370 = vsel %vm366, %v354, %v369
    %v371 = vsel %vm365, %v368, %v370
    %v372 = vsel %vm364, %v351, %v354
    %v373 = vsel %vm367, %v360, 920167782
    %v374 = vsel %vm366, %v357, %v373
    %v375 = vsel %vm365, %v372, %v374
    %v376 = vsel %vm364, %v354, %v357
    %v377 = vsel %vm367, %v363, 1326507024
    %v378 = vsel %vm366, %v360, %v377
    %v379 = vsel %vm365, %v376, %v378
    %v380 = vshll.u32 %v340, 8
    %v381 = vmul.u32.u64.compose %v380, %v379
    %v382 = vextract.low.u32 %v381
    %v383 = vextract.high.u32 %v381
    %v384 = vmul.u32.u64.compose %v380, %v375
    %v385 = vextract.low.u32 %v384
    %v386 = vextract.high.u32 %v384
    %v387 = vmul.u32 %v380, %v371
    %v388 = vadd.s32 %v383, %v385
    %vm389 = vc.u32 %v383, %v385
    %v390 = vadd.s32 %v386, 1
    %v391 = vsel %vm389, %v390, %v386
    %v392 = vadd.s32 %v387, %v391
    %v393 = vadd.s32 %v392, 536870912
    %v394 = vshrl.u32 %v393, 30
    %v395 = vshll.u32 %v394, 30
    %v396 = vsub.s32 %v392, %v395
    %vm397 = vcmp.lt.s32.totalorder %v396, 0
    %v398 = vsub.s32 0, %v396
    %v399 = vsel %vm397, %v398, %v396
    %v400 = vclz %v399
    %v401 = vsub.s32 %v400, 2
    %vm402 = vcmp.gt.s32.totalorder 0, %v401
    %v403 = vsel %vm402, 0, %v401
    %v404 = vsub.s32 32, %v403
    %v405 = vshll.u32 %v396, %v403
    %v406 = vshrl.u32 %v388, %v404
    %v407 = vor.u32 %v405, %v406
    %v408 = vsub.s32 4294967266, %v403
    %v409 = vadd.s32 %v408, 127
    %v410 = vshll.u32 %v409, 23
    %v411 = vor.u32 4788187, %v410
    %v412 = vand.u32 2147483647, %v411
    %v414 = vcvt.s32.f32 %v407
    %v415 = vmul.f32 %v414, %v412
    %v416 = vxor.u32 %v415, 2147483648
    %v417 = vsel %vm334, %v416, %v415
    %v418 = vsub.s32 4, %v394
    %v419 = vsel %vm334, %v418, %v394
    %v420 = vsel %vm333, %v324, %v417
    %v421 = vsel %vm333, 0, %v419
    %v422 = vcosq.f32.pop %v420
    %v423 = vsinq.f32.pop %v420
    %vm424 = vweird.f32 %v324
    %v425 = vand.u32 %v421, 3
    %vm426 = vcmp.lt.s32.totalorder %v425, 2
    %vm427 = vcmp.eq.s32.totalorder %v425, 0
    %v428 = vxor.u32 %v423, 2147483648
    %v429 = vsel %vm427, %v422, %v428
    %vm430 = vcmp.eq.s32.totalorder %v425, 2
    %v431 = vxor.u32 %v422, 2147483648
    %v432 = vsel %vm430, %v431, %v423
    %v433 = vsel %vm426, %v429, %v432
    %v434 = vsel %vm424, nan, %v433
    %v435 = vand.u32 2147483647, %v325
    %vm436 = vcmp.le.f32.partialorder %v435, 0.7853982
    %vm437 = vcmp.lt.s32.totalorder %v325, 0
    %v438 = vand.u32 %v325, 2139095040
    %v439 = vshrl.u32 %v438, 23
    %v440 = vsub.s32 %v439, 127
    %v441 = vand.u32 2147483647, %v325
    %v442 = vand.u32 %v441, 8388607
    %v443 = vor.u32 %v442, 8388608
    %v444 = vsub.s32 0, %v443
    %v445 = vadd.s32 %v440, 1
    %vm446 = vcmp.gt.s32.totalorder %v445, 0
    %v447 = vsel %vm446, %v445, 0
    %v448 = vshrl.u32 %v447, 5
    %v449 = vand.u32 %v447, 31
    %v450 = vsub.s32 32, %v449
    %v451 = vshrl.u32 683565275, %v450
    %v452 = vshll.u32 683565275, %v449
    %v453 = vshrl.u32 2475754826, %v450
    %v454 = vor.u32 %v452, %v453
    %v455 = vshll.u32 2475754826, %v449
    %v456 = vshrl.u32 2131351028, %v450
    %v457 = vor.u32 %v455, %v456
    %v458 = vshll.u32 2131351028, %v449
    %v459 = vshrl.u32 2102212464, %v450
    %v460 = vor.u32 %v458, %v459
    %v461 = vshll.u32 2102212464, %v449
    %v462 = vshrl.u32 920167782, %v450
    %v463 = vor.u32 %v461, %v462
    %v464 = vshll.u32 920167782, %v449
    %v465 = vshrl.u32 1326507024, %v450
    %v466 = vor.u32 %v464, %v465
    %vm467 = vcmp.lt.s32.totalorder %v448, 1
    %vm468 = vcmp.lt.s32.totalorder %v448, 2
    %vm469 = vcmp.lt.s32.totalorder %v448, 3
    %vm470 = vcmp.lt.s32.totalorder %v448, 4
    %v471 = vsel %vm467, %v451, %v454
    %v472 = vsel %vm470, %v460, 2102212464
    %v473 = vsel %vm469, %v457, %v472
    %v474 = vsel %vm468, %v471, %v473
    %v475 = vsel %vm467, %v454, %v457
    %v476 = vsel %vm470, %v463, 920167782
    %v477 = vsel %vm469, %v460, %v476
    %v478 = vsel %vm468, %v475, %v477
    %v479 = vsel %vm467, %v457, %v460
    %v480 = vsel %vm470, %v466, 1326507024
    %v481 = vsel %vm469, %v463, %v480
    %v482 = vsel %vm468, %v479, %v481
    %v483 = vshll.u32 %v443, 8
    %v484 = vmul.u32.u64.compose %v483, %v482
    %v485 = vextract.low.u32 %v484
    %v486 = vextract.high.u32 %v484
    %v487 = vmul.u32.u64.compose %v483, %v478
    %v488 = vextract.low.u32 %v487
    %v489 = vextract.high.u32 %v487
    %v490 = vmul.u32 %v483, %v474
    %v491 = vadd.s32 %v486, %v488
    %vm492 = vc.u32 %v486, %v488
    %v493 = vadd.s32 %v489, 1
    %v494 = vsel %vm492, %v493, %v489
    %v495 = vadd.s32 %v490, %v494
    %v496 = vadd.s32 %v495, 536870912
    %v497 = vshrl.u32 %v496, 30
    %v498 = vshll.u32 %v497, 30
    %v499 = vsub.s32 %v495, %v498
    %vm500 = vcmp.lt.s32.totalorder %v499, 0
    %v501 = vsub.s32 0, %v499
    %v502 = vsel %vm500, %v501, %v499
    %v503 = vclz %v502
    %v504 = vsub.s32 %v503, 2
    %vm505 = vcmp.gt.s32.totalorder 0, %v504
    %v506 = vsel %vm505, 0, %v504
    %v507 = vsub.s32 32, %v506
    %v508 = vshll.u32 %v499, %v506
    %v509 = vshrl.u32 %v491, %v507
    %v510 = vor.u32 %v508, %v509
    %v511 = vsub.s32 4294967266, %v506
    %v512 = vadd.s32 %v511, 127
    %v513 = vshll.u32 %v512, 23
    %v514 = vor.u32 4788187, %v513
    %v515 = vand.u32 2147483647, %v514
    %v517 = vcvt.s32.f32 %v510
    %v518 = vmul.f32 %v517, %v515
    %v519 = vxor.u32 %v518, 2147483648
    %v520 = vsel %vm437, %v519, %v518
    %v521 = vsub.s32 4, %v497
    %v522 = vsel %vm437, %v521, %v497
    %v523 = vsel %vm436, %v325, %v520
    %v524 = vsel %vm436, 0, %v522
    %v525 = vcosq.f32.pop %v523
    %v526 = vsinq.f32.pop %v523
    %vm527 = vweird.f32 %v325
    %v528 = vand.u32 %v524, 3
    %vm529 = vcmp.lt.s32.totalorder %v528, 2
    %vm530 = vcmp.eq.s32.totalorder %v528, 0
    %v531 = vxor.u32 %v526, 2147483648
    %v532 = vsel %vm530, %v525, %v531
    %vm533 = vcmp.eq.s32.totalorder %v528, 2
    %v534 = vxor.u32 %v525, 2147483648
    %v535 = vsel %vm533, %v534, %v526
    %v536 = vsel %vm529, %v532, %v535
    %v537 = vsel %vm527, nan, %v536
    %v538 = vand.u32 2147483647, %v326
    %vm539 = vcmp.le.f32.partialorder %v538, 0.7853982
    %vm540 = vcmp.lt.s32.totalorder %v326, 0
    %v541 = vand.u32 %v326, 2139095040
    %v542 = vshrl.u32 %v541, 23
    %v543 = vsub.s32 %v542, 127
    %v544 = vand.u32 2147483647, %v326
    %v545 = vand.u32 %v544, 8388607
    %v546 = vor.u32 %v545, 8388608
    %v547 = vsub.s32 0, %v546
    %v548 = vadd.s32 %v543, 1
    %vm549 = vcmp.gt.s32.totalorder %v548, 0
    %v550 = vsel %vm549, %v548, 0
    %v551 = vshrl.u32 %v550, 5
    %v552 = vand.u32 %v550, 31
    %v553 = vsub.s32 32, %v552
    %v554 = vshrl.u32 683565275, %v553
    %v555 = vshll.u32 683565275, %v552
    %v556 = vshrl.u32 2475754826, %v553
    %v557 = vor.u32 %v555, %v556
    %v558 = vshll.u32 2475754826, %v552
    %v559 = vshrl.u32 2131351028, %v553
    %v560 = vor.u32 %v558, %v559
    %v561 = vshll.u32 2131351028, %v552
    %v562 = vshrl.u32 2102212464, %v553
    %v563 = vor.u32 %v561, %v562
    %v564 = vshll.u32 2102212464, %v552
    %v565 = vshrl.u32 920167782, %v553
    %v566 = vor.u32 %v564, %v565
    %v567 = vshll.u32 920167782, %v552
    %v568 = vshrl.u32 1326507024, %v553
    %v569 = vor.u32 %v567, %v568
    %vm570 = vcmp.lt.s32.totalorder %v551, 1
    %vm571 = vcmp.lt.s32.totalorder %v551, 2
    %vm572 = vcmp.lt.s32.totalorder %v551, 3
    %vm573 = vcmp.lt.s32.totalorder %v551, 4
    %v574 = vsel %vm570, %v554, %v557
    %v575 = vsel %vm573, %v563, 2102212464
    %v576 = vsel %vm572, %v560, %v575
    %v577 = vsel %vm571, %v574, %v576
    %v578 = vsel %vm570, %v557, %v560
    %v579 = vsel %vm573, %v566, 920167782
    %v580 = vsel %vm572, %v563, %v579
    %v581 = vsel %vm571, %v578, %v580
    %v582 = vsel %vm570, %v560, %v563
    %v583 = vsel %vm573, %v569, 1326507024
    %v584 = vsel %vm572, %v566, %v583
    %v585 = vsel %vm571, %v582, %v584
    %v586 = vshll.u32 %v546, 8
    %v587 = vmul.u32.u64.compose %v586, %v585
    %v588 = vextract.low.u32 %v587
    %v589 = vextract.high.u32 %v587
    %v590 = vmul.u32.u64.compose %v586, %v581
    %v591 = vextract.low.u32 %v590
    %v592 = vextract.high.u32 %v590
    %v593 = vmul.u32 %v586, %v577
    %v594 = vadd.s32 %v589, %v591
    %vm595 = vc.u32 %v589, %v591
    %v596 = vadd.s32 %v592, 1
    %v597 = vsel %vm595, %v596, %v592
    %v598 = vadd.s32 %v593, %v597
    %v599 = vadd.s32 %v598, 536870912
    %v600 = vshrl.u32 %v599, 30
    %v601 = vshll.u32 %v600, 30
    %v602 = vsub.s32 %v598, %v601
    %vm603 = vcmp.lt.s32.totalorder %v602, 0
    %v604 = vsub.s32 0, %v602
    %v605 = vsel %vm603, %v604, %v602
    %v606 = vclz %v605
    %v607 = vsub.s32 %v606, 2
    %vm608 = vcmp.gt.s32.totalorder 0, %v607
    %v609 = vsel %vm608, 0, %v607
    %v610 = vsub.s32 32, %v609
    %v611 = vshll.u32 %v602, %v609
    %v612 = vshrl.u32 %v594, %v610
    %v613 = vor.u32 %v611, %v612
    %v614 = vsub.s32 4294967266, %v609
    %v615 = vadd.s32 %v614, 127
    %v616 = vshll.u32 %v615, 23
    %v617 = vor.u32 4788187, %v616
    %v618 = vand.u32 2147483647, %v617
    %v620 = vcvt.s32.f32 %v613
    %v621 = vmul.f32 %v620, %v618
    %v622 = vxor.u32 %v621, 2147483648
    %v623 = vsel %vm540, %v622, %v621
    %v624 = vsub.s32 4, %v600
    %v625 = vsel %vm540, %v624, %v600
    %v626 = vsel %vm539, %v326, %v623
    %v627 = vsel %vm539, 0, %v625
    %v628 = vcosq.f32.pop %v626
    %v629 = vsinq.f32.pop %v626
    %vm630 = vweird.f32 %v326
    %v631 = vand.u32 %v627, 3
    %vm632 = vcmp.lt.s32.totalorder %v631, 2
    %vm633 = vcmp.eq.s32.totalorder %v631, 0
    %v634 = vxor.u32 %v629, 2147483648
    %v635 = vsel %vm633, %v628, %v634
    %vm636 = vcmp.eq.s32.totalorder %v631, 2
    %v637 = vxor.u32 %v628, 2147483648
    %v638 = vsel %vm636, %v637, %v629
    %v639 = vsel %vm632, %v635, %v638
    %v640 = vsel %vm630, nan, %v639
    %v641 = vand.u32 2147483647, %v327
    %vm642 = vcmp.le.f32.partialorder %v641, 0.7853982
    %vm643 = vcmp.lt.s32.totalorder %v327, 0
    %v644 = vand.u32 %v327, 2139095040
    %v645 = vshrl.u32 %v644, 23
    %v646 = vsub.s32 %v645, 127
    %v647 = vand.u32 2147483647, %v327
    %v648 = vand.u32 %v647, 8388607
    %v649 = vor.u32 %v648, 8388608
    %v650 = vsub.s32 0, %v649
    %v651 = vadd.s32 %v646, 1
    %vm652 = vcmp.gt.s32.totalorder %v651, 0
    %v653 = vsel %vm652, %v651, 0
    %v654 = vshrl.u32 %v653, 5
    %v655 = vand.u32 %v653, 31
    %v656 = vsub.s32 32, %v655
    %v657 = vshrl.u32 683565275, %v656
    %v658 = vshll.u32 683565275, %v655
    %v659 = vshrl.u32 2475754826, %v656
    %v660 = vor.u32 %v658, %v659
    %v661 = vshll.u32 2475754826, %v655
    %v662 = vshrl.u32 2131351028, %v656
    %v663 = vor.u32 %v661, %v662
    %v664 = vshll.u32 2131351028, %v655
    %v665 = vshrl.u32 2102212464, %v656
    %v666 = vor.u32 %v664, %v665
    %v667 = vshll.u32 2102212464, %v655
    %v668 = vshrl.u32 920167782, %v656
    %v669 = vor.u32 %v667, %v668
    %v670 = vshll.u32 920167782, %v655
    %v671 = vshrl.u32 1326507024, %v656
    %v672 = vor.u32 %v670, %v671
    %vm673 = vcmp.lt.s32.totalorder %v654, 1
    %vm674 = vcmp.lt.s32.totalorder %v654, 2
    %vm675 = vcmp.lt.s32.totalorder %v654, 3
    %vm676 = vcmp.lt.s32.totalorder %v654, 4
    %v677 = vsel %vm673, %v657, %v660
    %v678 = vsel %vm676, %v666, 2102212464
    %v679 = vsel %vm675, %v663, %v678
    %v680 = vsel %vm674, %v677, %v679
    %v681 = vsel %vm673, %v660, %v663
    %v682 = vsel %vm676, %v669, 920167782
    %v683 = vsel %vm675, %v666, %v682
    %v684 = vsel %vm674, %v681, %v683
    %v685 = vsel %vm673, %v663, %v666
    %v686 = vsel %vm676, %v672, 1326507024
    %v687 = vsel %vm675, %v669, %v686
    %v688 = vsel %vm674, %v685, %v687
    %v689 = vshll.u32 %v649, 8
    %v690 = vmul.u32.u64.compose %v689, %v688
    %v691 = vextract.low.u32 %v690
    %v692 = vextract.high.u32 %v690
    %v693 = vmul.u32.u64.compose %v689, %v684
    %v694 = vextract.low.u32 %v693
    %v695 = vextract.high.u32 %v693
    %v696 = vmul.u32 %v689, %v680
    %v697 = vadd.s32 %v692, %v694
    %vm698 = vc.u32 %v692, %v694
    %v699 = vadd.s32 %v695, 1
    %v700 = vsel %vm698, %v699, %v695
    %v701 = vadd.s32 %v696, %v700
    %v702 = vadd.s32 %v701, 536870912
    %v703 = vshrl.u32 %v702, 30
    %v704 = vshll.u32 %v703, 30
    %v705 = vsub.s32 %v701, %v704
    %vm706 = vcmp.lt.s32.totalorder %v705, 0
    %v707 = vsub.s32 0, %v705
    %v708 = vsel %vm706, %v707, %v705
    %v709 = vclz %v708
    %v710 = vsub.s32 %v709, 2
    %vm711 = vcmp.gt.s32.totalorder 0, %v710
    %v712 = vsel %vm711, 0, %v710
    %v713 = vsub.s32 32, %v712
    %v714 = vshll.u32 %v705, %v712
    %v715 = vshrl.u32 %v697, %v713
    %v716 = vor.u32 %v714, %v715
    %v717 = vsub.s32 4294967266, %v712
    %v718 = vadd.s32 %v717, 127
    %v719 = vshll.u32 %v718, 23
    %v720 = vor.u32 4788187, %v719
    %v721 = vand.u32 2147483647, %v720
    %v723 = vcvt.s32.f32 %v716
    %v724 = vmul.f32 %v723, %v721
    %v725 = vxor.u32 %v724, 2147483648
    %v726 = vsel %vm643, %v725, %v724
    %v727 = vsub.s32 4, %v703
    %v728 = vsel %vm643, %v727, %v703
    %v729 = vsel %vm642, %v327, %v726
    %v730 = vsel %vm642, 0, %v728
    %v731 = vcosq.f32.pop %v729
    %v732 = vsinq.f32.pop %v729
    %vm733 = vweird.f32 %v327
    %v734 = vand.u32 %v730, 3
    %vm735 = vcmp.lt.s32.totalorder %v734, 2
    %vm736 = vcmp.eq.s32.totalorder %v734, 0
    %v737 = vxor.u32 %v732, 2147483648
    %v738 = vsel %vm736, %v731, %v737
    %vm739 = vcmp.eq.s32.totalorder %v734, 2
    %v740 = vxor.u32 %v731, 2147483648
    %v741 = vsel %vm739, %v740, %v732
    %v742 = vsel %vm735, %v738, %v741
    %v743 = vsel %vm733, nan, %v742
    %v744 = vand.u32 2147483647, %v328
    %vm745 = vcmp.le.f32.partialorder %v744, 0.7853982
    %vm746 = vcmp.lt.s32.totalorder %v328, 0
    %v747 = vand.u32 %v328, 2139095040
    %v748 = vshrl.u32 %v747, 23
    %v749 = vsub.s32 %v748, 127
    %v750 = vand.u32 2147483647, %v328
    %v751 = vand.u32 %v750, 8388607
    %v752 = vor.u32 %v751, 8388608
    %v753 = vsub.s32 0, %v752
    %v754 = vadd.s32 %v749, 1
    %vm755 = vcmp.gt.s32.totalorder %v754, 0
    %v756 = vsel %vm755, %v754, 0
    %v757 = vshrl.u32 %v756, 5
    %v758 = vand.u32 %v756, 31
    %v759 = vsub.s32 32, %v758
    %v760 = vshrl.u32 683565275, %v759
    %v761 = vshll.u32 683565275, %v758
    %v762 = vshrl.u32 2475754826, %v759
    %v763 = vor.u32 %v761, %v762
    %v764 = vshll.u32 2475754826, %v758
    %v765 = vshrl.u32 2131351028, %v759
    %v766 = vor.u32 %v764, %v765
    %v767 = vshll.u32 2131351028, %v758
    %v768 = vshrl.u32 2102212464, %v759
    %v769 = vor.u32 %v767, %v768
    %v770 = vshll.u32 2102212464, %v758
    %v771 = vshrl.u32 920167782, %v759
    %v772 = vor.u32 %v770, %v771
    %v773 = vshll.u32 920167782, %v758
    %v774 = vshrl.u32 1326507024, %v759
    %v775 = vor.u32 %v773, %v774
    %vm776 = vcmp.lt.s32.totalorder %v757, 1
    %vm777 = vcmp.lt.s32.totalorder %v757, 2
    %vm778 = vcmp.lt.s32.totalorder %v757, 3
    %vm779 = vcmp.lt.s32.totalorder %v757, 4
    %v780 = vsel %vm776, %v760, %v763
    %v781 = vsel %vm779, %v769, 2102212464
    %v782 = vsel %vm778, %v766, %v781
    %v783 = vsel %vm777, %v780, %v782
    %v784 = vsel %vm776, %v763, %v766
    %v785 = vsel %vm779, %v772, 920167782
    %v786 = vsel %vm778, %v769, %v785
    %v787 = vsel %vm777, %v784, %v786
    %v788 = vsel %vm776, %v766, %v769
    %v789 = vsel %vm779, %v775, 1326507024
    %v790 = vsel %vm778, %v772, %v789
    %v791 = vsel %vm777, %v788, %v790
    %v792 = vshll.u32 %v752, 8
    %v793 = vmul.u32.u64.compose %v792, %v791
    %v794 = vextract.low.u32 %v793
    %v795 = vextract.high.u32 %v793
    %v796 = vmul.u32.u64.compose %v792, %v787
    %v797 = vextract.low.u32 %v796
    %v798 = vextract.high.u32 %v796
    %v799 = vmul.u32 %v792, %v783
    %v800 = vadd.s32 %v795, %v797
    %vm801 = vc.u32 %v795, %v797
    %v802 = vadd.s32 %v798, 1
    %v803 = vsel %vm801, %v802, %v798
    %v804 = vadd.s32 %v799, %v803
    %v805 = vadd.s32 %v804, 536870912
    %v806 = vshrl.u32 %v805, 30
    %v807 = vshll.u32 %v806, 30
    %v808 = vsub.s32 %v804, %v807
    %vm809 = vcmp.lt.s32.totalorder %v808, 0
    %v810 = vsub.s32 0, %v808
    %v811 = vsel %vm809, %v810, %v808
    %v812 = vclz %v811
    %v813 = vsub.s32 %v812, 2
    %vm814 = vcmp.gt.s32.totalorder 0, %v813
    %v815 = vsel %vm814, 0, %v813
    %v816 = vsub.s32 32, %v815
    %v817 = vshll.u32 %v808, %v815
    %v818 = vshrl.u32 %v800, %v816
    %v819 = vor.u32 %v817, %v818
    %v820 = vsub.s32 4294967266, %v815
    %v821 = vadd.s32 %v820, 127
    %v822 = vshll.u32 %v821, 23
    %v823 = vor.u32 4788187, %v822
    %v824 = vand.u32 2147483647, %v823
    %v826 = vcvt.s32.f32 %v819
    %v827 = vmul.f32 %v826, %v824
    %v828 = vxor.u32 %v827, 2147483648
    %v829 = vsel %vm746, %v828, %v827
    %v830 = vsub.s32 4, %v806
    %v831 = vsel %vm746, %v830, %v806
    %v832 = vsel %vm745, %v328, %v829
    %v833 = vsel %vm745, 0, %v831
    %v834 = vcosq.f32.pop %v832
    %v835 = vsinq.f32.pop %v832
    %vm836 = vweird.f32 %v328
    %v837 = vand.u32 %v833, 3
    %vm838 = vcmp.lt.s32.totalorder %v837, 2
    %vm839 = vcmp.eq.s32.totalorder %v837, 0
    %v840 = vxor.u32 %v835, 2147483648
    %v841 = vsel %vm839, %v834, %v840
    %vm842 = vcmp.eq.s32.totalorder %v837, 2
    %v843 = vxor.u32 %v834, 2147483648
    %v844 = vsel %vm842, %v843, %v835
    %v845 = vsel %vm838, %v841, %v844
    %v846 = vsel %vm836, nan, %v845
    %v847 = vand.u32 2147483647, %v329
    %vm848 = vcmp.le.f32.partialorder %v847, 0.7853982
    %vm849 = vcmp.lt.s32.totalorder %v329, 0
    %v850 = vand.u32 %v329, 2139095040
    %v851 = vshrl.u32 %v850, 23
    %v852 = vsub.s32 %v851, 127
    %v853 = vand.u32 2147483647, %v329
    %v854 = vand.u32 %v853, 8388607
    %v855 = vor.u32 %v854, 8388608
    %v856 = vsub.s32 0, %v855
    %v857 = vadd.s32 %v852, 1
    %vm858 = vcmp.gt.s32.totalorder %v857, 0
    %v859 = vsel %vm858, %v857, 0
    %v860 = vshrl.u32 %v859, 5
    %v861 = vand.u32 %v859, 31
    %v862 = vsub.s32 32, %v861
    %v863 = vshrl.u32 683565275, %v862
    %v864 = vshll.u32 683565275, %v861
    %v865 = vshrl.u32 2475754826, %v862
    %v866 = vor.u32 %v864, %v865
    %v867 = vshll.u32 2475754826, %v861
    %v868 = vshrl.u32 2131351028, %v862
    %v869 = vor.u32 %v867, %v868
    %v870 = vshll.u32 2131351028, %v861
    %v871 = vshrl.u32 2102212464, %v862
    %v872 = vor.u32 %v870, %v871
    %v873 = vshll.u32 2102212464, %v861
    %v874 = vshrl.u32 920167782, %v862
    %v875 = vor.u32 %v873, %v874
    %v876 = vshll.u32 920167782, %v861
    %v877 = vshrl.u32 1326507024, %v862
    %v878 = vor.u32 %v876, %v877
    %vm879 = vcmp.lt.s32.totalorder %v860, 1
    %vm880 = vcmp.lt.s32.totalorder %v860, 2
    %vm881 = vcmp.lt.s32.totalorder %v860, 3
    %vm882 = vcmp.lt.s32.totalorder %v860, 4
    %v883 = vsel %vm879, %v863, %v866
    %v884 = vsel %vm882, %v872, 2102212464
    %v885 = vsel %vm881, %v869, %v884
    %v886 = vsel %vm880, %v883, %v885
    %v887 = vsel %vm879, %v866, %v869
    %v888 = vsel %vm882, %v875, 920167782
    %v889 = vsel %vm881, %v872, %v888
    %v890 = vsel %vm880, %v887, %v889
    %v891 = vsel %vm879, %v869, %v872
    %v892 = vsel %vm882, %v878, 1326507024
    %v893 = vsel %vm881, %v875, %v892
    %v894 = vsel %vm880, %v891, %v893
    %v895 = vshll.u32 %v855, 8
    %v896 = vmul.u32.u64.compose %v895, %v894
    %v897 = vextract.low.u32 %v896
    %v898 = vextract.high.u32 %v896
    %v899 = vmul.u32.u64.compose %v895, %v890
    %v900 = vextract.low.u32 %v899
    %v901 = vextract.high.u32 %v899
    %v902 = vmul.u32 %v895, %v886
    %v903 = vadd.s32 %v898, %v900
    %vm904 = vc.u32 %v898, %v900
    %v905 = vadd.s32 %v901, 1
    %v906 = vsel %vm904, %v905, %v901
    %v907 = vadd.s32 %v902, %v906
    %v908 = vadd.s32 %v907, 536870912
    %v909 = vshrl.u32 %v908, 30
    %v910 = vshll.u32 %v909, 30
    %v911 = vsub.s32 %v907, %v910
    %vm912 = vcmp.lt.s32.totalorder %v911, 0
    %v913 = vsub.s32 0, %v911
    %v914 = vsel %vm912, %v913, %v911
    %v915 = vclz %v914
    %v916 = vsub.s32 %v915, 2
    %vm917 = vcmp.gt.s32.totalorder 0, %v916
    %v918 = vsel %vm917, 0, %v916
    %v919 = vsub.s32 32, %v918
    %v920 = vshll.u32 %v911, %v918
    %v921 = vshrl.u32 %v903, %v919
    %v922 = vor.u32 %v920, %v921
    %v923 = vsub.s32 4294967266, %v918
    %v924 = vadd.s32 %v923, 127
    %v925 = vshll.u32 %v924, 23
    %v926 = vor.u32 4788187, %v925
    %v927 = vand.u32 2147483647, %v926
    %v929 = vcvt.s32.f32 %v922
    %v930 = vmul.f32 %v929, %v927
    %v931 = vxor.u32 %v930, 2147483648
    %v932 = vsel %vm849, %v931, %v930
    %v933 = vsub.s32 4, %v909
    %v934 = vsel %vm849, %v933, %v909
    %v935 = vsel %vm848, %v329, %v932
    %v936 = vsel %vm848, 0, %v934
    %v937 = vcosq.f32.pop %v935
    %v938 = vsinq.f32.pop %v935
    %vm939 = vweird.f32 %v329
    %v940 = vand.u32 %v936, 3
    %vm941 = vcmp.lt.s32.totalorder %v940, 2
    %vm942 = vcmp.eq.s32.totalorder %v940, 0
    %v943 = vxor.u32 %v938, 2147483648
    %v944 = vsel %vm942, %v937, %v943
    %vm945 = vcmp.eq.s32.totalorder %v940, 2
    %v946 = vxor.u32 %v937, 2147483648
    %v947 = vsel %vm945, %v946, %v938
    %v948 = vsel %vm941, %v944, %v947
    %v949 = vsel %vm939, nan, %v948
    %v950 = vand.u32 2147483647, %v330
    %vm951 = vcmp.le.f32.partialorder %v950, 0.7853982
    %vm952 = vcmp.lt.s32.totalorder %v330, 0
    %v953 = vand.u32 %v330, 2139095040
    %v954 = vshrl.u32 %v953, 23
    %v955 = vsub.s32 %v954, 127
    %v956 = vand.u32 2147483647, %v330
    %v957 = vand.u32 %v956, 8388607
    %v958 = vor.u32 %v957, 8388608
    %v959 = vsub.s32 0, %v958
    %v960 = vadd.s32 %v955, 1
    %vm961 = vcmp.gt.s32.totalorder %v960, 0
    %v962 = vsel %vm961, %v960, 0
    %v963 = vshrl.u32 %v962, 5
    %v964 = vand.u32 %v962, 31
    %v965 = vsub.s32 32, %v964
    %v966 = vshrl.u32 683565275, %v965
    %v967 = vshll.u32 683565275, %v964
    %v968 = vshrl.u32 2475754826, %v965
    %v969 = vor.u32 %v967, %v968
    %v970 = vshll.u32 2475754826, %v964
    %v971 = vshrl.u32 2131351028, %v965
    %v972 = vor.u32 %v970, %v971
    %v973 = vshll.u32 2131351028, %v964
    %v974 = vshrl.u32 2102212464, %v965
    %v975 = vor.u32 %v973, %v974
    %v976 = vshll.u32 2102212464, %v964
    %v977 = vshrl.u32 920167782, %v965
    %v978 = vor.u32 %v976, %v977
    %v979 = vshll.u32 920167782, %v964
    %v980 = vshrl.u32 1326507024, %v965
    %v981 = vor.u32 %v979, %v980
    %vm982 = vcmp.lt.s32.totalorder %v963, 1
    %vm983 = vcmp.lt.s32.totalorder %v963, 2
    %vm984 = vcmp.lt.s32.totalorder %v963, 3
    %vm985 = vcmp.lt.s32.totalorder %v963, 4
    %v986 = vsel %vm982, %v966, %v969
    %v987 = vsel %vm985, %v975, 2102212464
    %v988 = vsel %vm984, %v972, %v987
    %v989 = vsel %vm983, %v986, %v988
    %v990 = vsel %vm982, %v969, %v972
    %v991 = vsel %vm985, %v978, 920167782
    %v992 = vsel %vm984, %v975, %v991
    %v993 = vsel %vm983, %v990, %v992
    %v994 = vsel %vm982, %v972, %v975
    %v995 = vsel %vm985, %v981, 1326507024
    %v996 = vsel %vm984, %v978, %v995
    %v997 = vsel %vm983, %v994, %v996
    %v998 = vshll.u32 %v958, 8
    %v999 = vmul.u32.u64.compose %v998, %v997
    %v1000 = vextract.low.u32 %v999
    %v1001 = vextract.high.u32 %v999
    %v1002 = vmul.u32.u64.compose %v998, %v993
    %v1003 = vextract.low.u32 %v1002
    %v1004 = vextract.high.u32 %v1002
    %v1005 = vmul.u32 %v998, %v989
    %v1006 = vadd.s32 %v1001, %v1003
    %vm1007 = vc.u32 %v1001, %v1003
    %v1008 = vadd.s32 %v1004, 1
    %v1009 = vsel %vm1007, %v1008, %v1004
    %v1010 = vadd.s32 %v1005, %v1009
    %v1011 = vadd.s32 %v1010, 536870912
    %v1012 = vshrl.u32 %v1011, 30
    %v1013 = vshll.u32 %v1012, 30
    %v1014 = vsub.s32 %v1010, %v1013
    %vm1015 = vcmp.lt.s32.totalorder %v1014, 0
    %v1016 = vsub.s32 0, %v1014
    %v1017 = vsel %vm1015, %v1016, %v1014
    %v1018 = vclz %v1017
    %v1019 = vsub.s32 %v1018, 2
    %vm1020 = vcmp.gt.s32.totalorder 0, %v1019
    %v1021 = vsel %vm1020, 0, %v1019
    %v1022 = vsub.s32 32, %v1021
    %v1023 = vshll.u32 %v1014, %v1021
    %v1024 = vshrl.u32 %v1006, %v1022
    %v1025 = vor.u32 %v1023, %v1024
    %v1026 = vsub.s32 4294967266, %v1021
    %v1027 = vadd.s32 %v1026, 127
    %v1028 = vshll.u32 %v1027, 23
    %v1029 = vor.u32 4788187, %v1028
    %v1030 = vand.u32 2147483647, %v1029
    %v1032 = vcvt.s32.f32 %v1025
    %v1033 = vmul.f32 %v1032, %v1030
    %v1034 = vxor.u32 %v1033, 2147483648
    %v1035 = vsel %vm952, %v1034, %v1033
    %v1036 = vsub.s32 4, %v1012
    %v1037 = vsel %vm952, %v1036, %v1012
    %v1038 = vsel %vm951, %v330, %v1035
    %v1039 = vsel %vm951, 0, %v1037
    %v1040 = vcosq.f32.pop %v1038
    %v1041 = vsinq.f32.pop %v1038
    %vm1042 = vweird.f32 %v330
    %v1043 = vand.u32 %v1039, 3
    %vm1044 = vcmp.lt.s32.totalorder %v1043, 2
    %vm1045 = vcmp.eq.s32.totalorder %v1043, 0
    %v1046 = vxor.u32 %v1041, 2147483648
    %v1047 = vsel %vm1045, %v1040, %v1046
    %vm1048 = vcmp.eq.s32.totalorder %v1043, 2
    %v1049 = vxor.u32 %v1040, 2147483648
    %v1050 = vsel %vm1048, %v1049, %v1041
    %v1051 = vsel %vm1044, %v1047, %v1050
    %v1052 = vsel %vm1042, nan, %v1051
    %v1053 = vand.u32 2147483647, %v331
    %vm1054 = vcmp.le.f32.partialorder %v1053, 0.7853982
    %vm1055 = vcmp.lt.s32.totalorder %v331, 0
    %v1056 = vand.u32 %v331, 2139095040
    %v1057 = vshrl.u32 %v1056, 23
    %v1058 = vsub.s32 %v1057, 127
    %v1059 = vand.u32 2147483647, %v331
    %v1060 = vand.u32 %v1059, 8388607
    %v1061 = vor.u32 %v1060, 8388608
    %v1062 = vsub.s32 0, %v1061
    %v1063 = vadd.s32 %v1058, 1
    %vm1064 = vcmp.gt.s32.totalorder %v1063, 0
    %v1065 = vsel %vm1064, %v1063, 0
    %v1066 = vshrl.u32 %v1065, 5
    %v1067 = vand.u32 %v1065, 31
    %v1068 = vsub.s32 32, %v1067
    %v1069 = vshrl.u32 683565275, %v1068
    %v1070 = vshll.u32 683565275, %v1067
    %v1071 = vshrl.u32 2475754826, %v1068
    %v1072 = vor.u32 %v1070, %v1071
    %v1073 = vshll.u32 2475754826, %v1067
    %v1074 = vshrl.u32 2131351028, %v1068
    %v1075 = vor.u32 %v1073, %v1074
    %v1076 = vshll.u32 2131351028, %v1067
    %v1077 = vshrl.u32 2102212464, %v1068
    %v1078 = vor.u32 %v1076, %v1077
    %v1079 = vshll.u32 2102212464, %v1067
    %v1080 = vshrl.u32 920167782, %v1068
    %v1081 = vor.u32 %v1079, %v1080
    %v1082 = vshll.u32 920167782, %v1067
    %v1083 = vshrl.u32 1326507024, %v1068
    %v1084 = vor.u32 %v1082, %v1083
    %vm1085 = vcmp.lt.s32.totalorder %v1066, 1
    %vm1086 = vcmp.lt.s32.totalorder %v1066, 2
    %vm1087 = vcmp.lt.s32.totalorder %v1066, 3
    %vm1088 = vcmp.lt.s32.totalorder %v1066, 4
    %v1089 = vsel %vm1085, %v1069, %v1072
    %v1090 = vsel %vm1088, %v1078, 2102212464
    %v1091 = vsel %vm1087, %v1075, %v1090
    %v1092 = vsel %vm1086, %v1089, %v1091
    %v1093 = vsel %vm1085, %v1072, %v1075
    %v1094 = vsel %vm1088, %v1081, 920167782
    %v1095 = vsel %vm1087, %v1078, %v1094
    %v1096 = vsel %vm1086, %v1093, %v1095
    %v1097 = vsel %vm1085, %v1075, %v1078
    %v1098 = vsel %vm1088, %v1084, 1326507024
    %v1099 = vsel %vm1087, %v1081, %v1098
    %v1100 = vsel %vm1086, %v1097, %v1099
    %v1101 = vshll.u32 %v1061, 8
    %v1102 = vmul.u32.u64.compose %v1101, %v1100
    %v1103 = vextract.low.u32 %v1102
    %v1104 = vextract.high.u32 %v1102
    %v1105 = vmul.u32.u64.compose %v1101, %v1096
    %v1106 = vextract.low.u32 %v1105
    %v1107 = vextract.high.u32 %v1105
    %v1108 = vmul.u32 %v1101, %v1092
    %v1109 = vadd.s32 %v1104, %v1106
    %vm1110 = vc.u32 %v1104, %v1106
    %v1111 = vadd.s32 %v1107, 1
    %v1112 = vsel %vm1110, %v1111, %v1107
    %v1113 = vadd.s32 %v1108, %v1112
    %v1114 = vadd.s32 %v1113, 536870912
    %v1115 = vshrl.u32 %v1114, 30
    %v1116 = vshll.u32 %v1115, 30
    %v1117 = vsub.s32 %v1113, %v1116
    %vm1118 = vcmp.lt.s32.totalorder %v1117, 0
    %v1119 = vsub.s32 0, %v1117
    %v1120 = vsel %vm1118, %v1119, %v1117
    %v1121 = vclz %v1120
    %v1122 = vsub.s32 %v1121, 2
    %vm1123 = vcmp.gt.s32.totalorder 0, %v1122
    %v1124 = vsel %vm1123, 0, %v1122
    %v1125 = vsub.s32 32, %v1124
    %v1126 = vshll.u32 %v1117, %v1124
    %v1127 = vshrl.u32 %v1109, %v1125
    %v1128 = vor.u32 %v1126, %v1127
    %v1129 = vsub.s32 4294967266, %v1124
    %v1130 = vadd.s32 %v1129, 127
    %v1131 = vshll.u32 %v1130, 23
    %v1132 = vor.u32 4788187, %v1131
    %v1133 = vand.u32 2147483647, %v1132
    %v1135 = vcvt.s32.f32 %v1128
    %v1136 = vmul.f32 %v1135, %v1133
    %v1137 = vxor.u32 %v1136, 2147483648
    %v1138 = vsel %vm1055, %v1137, %v1136
    %v1139 = vsub.s32 4, %v1115
    %v1140 = vsel %vm1055, %v1139, %v1115
    %v1141 = vsel %vm1054, %v331, %v1138
    %v1142 = vsel %vm1054, 0, %v1140
    %v1143 = vcosq.f32.pop %v1141
    %v1144 = vsinq.f32.pop %v1141
    %vm1145 = vweird.f32 %v331
    %v1146 = vand.u32 %v1142, 3
    %vm1147 = vcmp.lt.s32.totalorder %v1146, 2
    %vm1148 = vcmp.eq.s32.totalorder %v1146, 0
    %v1149 = vxor.u32 %v1144, 2147483648
    %v1150 = vsel %vm1148, %v1143, %v1149
    %vm1151 = vcmp.eq.s32.totalorder %v1146, 2
    %v1152 = vxor.u32 %v1143, 2147483648
    %v1153 = vsel %vm1151, %v1152, %v1144
    %v1154 = vsel %vm1147, %v1150, %v1153
    %v1155 = vsel %vm1145, nan, %v1154
    %v1156 = vmul.f32 %v274, %v434
    %v1157 = vmul.f32 %v281, %v537
    %v1158 = vmul.f32 %v288, %v640
    %v1159 = vmul.f32 %v295, %v743
    %v1160 = vmul.f32 %v302, %v846
    %v1161 = vmul.f32 %v309, %v949
    %v1162 = vmul.f32 %v316, %v1052
    %v1163 = vmul.f32 %v323, %v1155
    %1164 = vst [vmem:[#allocation3] sm:$0xff] %v1156
    %1165 = vst [vmem:[#allocation3 + $0x8] sm:$0xff] %v1157
    %1166 = vst [vmem:[#allocation3 + $0x10] sm:$0xff] %v1158
    %1167 = vst [vmem:[#allocation3 + $0x18] sm:$0xff] %v1159
    %1168 = vst [vmem:[#allocation3 + $0x20] sm:$0xff] %v1160
    %1169 = vst [vmem:[#allocation3 + $0x28] sm:$0xff] %v1161
    %1170 = vst [vmem:[#allocation3 + $0x30] sm:$0xff] %v1162
    %1171 = vst [vmem:[#allocation3 + $0x38] sm:$0xff] %v1163
    %v1172 = vand.u32 2147483647, %v324
    %vm1173 = vcmp.le.f32.partialorder %v1172, 0.7853982
    %vm1174 = vcmp.lt.s32.totalorder %v324, 0
    %v1175 = vand.u32 %v324, 2139095040
    %v1176 = vshrl.u32 %v1175, 23
    %v1177 = vsub.s32 %v1176, 127
    %v1178 = vand.u32 2147483647, %v324
    %v1179 = vand.u32 %v1178, 8388607
    %v1180 = vor.u32 %v1179, 8388608
    %v1181 = vsub.s32 0, %v1180
    %v1182 = vadd.s32 %v1177, 1
    %vm1183 = vcmp.gt.s32.totalorder %v1182, 0
    %v1184 = vsel %vm1183, %v1182, 0
    %v1185 = vshrl.u32 %v1184, 5
    %v1186 = vand.u32 %v1184, 31
    %v1187 = vsub.s32 32, %v1186
    %v1188 = vshrl.u32 683565275, %v1187
    %v1189 = vshll.u32 683565275, %v1186
    %v1190 = vshrl.u32 2475754826, %v1187
    %v1191 = vor.u32 %v1189, %v1190
    %v1192 = vshll.u32 2475754826, %v1186
    %v1193 = vshrl.u32 2131351028, %v1187
    %v1194 = vor.u32 %v1192, %v1193
    %v1195 = vshll.u32 2131351028, %v1186
    %v1196 = vshrl.u32 2102212464, %v1187
    %v1197 = vor.u32 %v1195, %v1196
    %v1198 = vshll.u32 2102212464, %v1186
    %v1199 = vshrl.u32 920167782, %v1187
    %v1200 = vor.u32 %v1198, %v1199
    %v1201 = vshll.u32 920167782, %v1186
    %v1202 = vshrl.u32 1326507024, %v1187
    %v1203 = vor.u32 %v1201, %v1202
    %vm1204 = vcmp.lt.s32.totalorder %v1185, 1
    %vm1205 = vcmp.lt.s32.totalorder %v1185, 2
    %vm1206 = vcmp.lt.s32.totalorder %v1185, 3
    %vm1207 = vcmp.lt.s32.totalorder %v1185, 4
    %v1208 = vsel %vm1204, %v1188, %v1191
    %v1209 = vsel %vm1207, %v1197, 2102212464
    %v1210 = vsel %vm1206, %v1194, %v1209
    %v1211 = vsel %vm1205, %v1208, %v1210
    %v1212 = vsel %vm1204, %v1191, %v1194
    %v1213 = vsel %vm1207, %v1200, 920167782
    %v1214 = vsel %vm1206, %v1197, %v1213
    %v1215 = vsel %vm1205, %v1212, %v1214
    %v1216 = vsel %vm1204, %v1194, %v1197
    %v1217 = vsel %vm1207, %v1203, 1326507024
    %v1218 = vsel %vm1206, %v1200, %v1217
    %v1219 = vsel %vm1205, %v1216, %v1218
    %v1220 = vshll.u32 %v1180, 8
    %v1221 = vmul.u32.u64.compose %v1220, %v1219
    %v1222 = vextract.low.u32 %v1221
    %v1223 = vextract.high.u32 %v1221
    %v1224 = vmul.u32.u64.compose %v1220, %v1215
    %v1225 = vextract.low.u32 %v1224
    %v1226 = vextract.high.u32 %v1224
    %v1227 = vmul.u32 %v1220, %v1211
    %v1228 = vadd.s32 %v1223, %v1225
    %vm1229 = vc.u32 %v1223, %v1225
    %v1230 = vadd.s32 %v1226, 1
    %v1231 = vsel %vm1229, %v1230, %v1226
    %v1232 = vadd.s32 %v1227, %v1231
    %v1233 = vadd.s32 %v1232, 536870912
    %v1234 = vshrl.u32 %v1233, 30
    %v1235 = vshll.u32 %v1234, 30
    %v1236 = vsub.s32 %v1232, %v1235
    %vm1237 = vcmp.lt.s32.totalorder %v1236, 0
    %v1238 = vsub.s32 0, %v1236
    %v1239 = vsel %vm1237, %v1238, %v1236
    %v1240 = vclz %v1239
    %v1241 = vsub.s32 %v1240, 2
    %vm1242 = vcmp.gt.s32.totalorder 0, %v1241
    %v1243 = vsel %vm1242, 0, %v1241
    %v1244 = vsub.s32 32, %v1243
    %v1245 = vshll.u32 %v1236, %v1243
    %v1246 = vshrl.u32 %v1228, %v1244
    %v1247 = vor.u32 %v1245, %v1246
    %v1248 = vsub.s32 4294967266, %v1243
    %v1249 = vadd.s32 %v1248, 127
    %v1250 = vshll.u32 %v1249, 23
    %v1251 = vor.u32 4788187, %v1250
    %v1252 = vand.u32 2147483647, %v1251
    %v1254 = vcvt.s32.f32 %v1247
    %v1255 = vmul.f32 %v1254, %v1252
    %v1256 = vxor.u32 %v1255, 2147483648
    %v1257 = vsel %vm1174, %v1256, %v1255
    %v1258 = vsub.s32 4, %v1234
    %v1259 = vsel %vm1174, %v1258, %v1234
    %v1260 = vsel %vm1173, %v324, %v1257
    %v1261 = vsel %vm1173, 0, %v1259
    %v1262 = vcosq.f32.pop %v1260
    %v1263 = vsinq.f32.pop %v1260
    %vm1264 = vweird.f32 %v324
    %v1265 = vadd.s32 %v1261, 3
    %v1266 = vand.u32 %v1265, 3
    %vm1267 = vcmp.lt.s32.totalorder %v1266, 2
    %vm1268 = vcmp.eq.s32.totalorder %v1266, 0
    %v1269 = vxor.u32 %v1263, 2147483648
    %v1270 = vsel %vm1268, %v1262, %v1269
    %vm1271 = vcmp.eq.s32.totalorder %v1266, 2
    %v1272 = vxor.u32 %v1262, 2147483648
    %v1273 = vsel %vm1271, %v1272, %v1263
    %v1274 = vsel %vm1267, %v1270, %v1273
    %v1275 = vsel %vm1264, nan, %v1274
    %v1276 = vand.u32 2147483647, %v325
    %vm1277 = vcmp.le.f32.partialorder %v1276, 0.7853982
    %vm1278 = vcmp.lt.s32.totalorder %v325, 0
    %v1279 = vand.u32 %v325, 2139095040
    %v1280 = vshrl.u32 %v1279, 23
    %v1281 = vsub.s32 %v1280, 127
    %v1282 = vand.u32 2147483647, %v325
    %v1283 = vand.u32 %v1282, 8388607
    %v1284 = vor.u32 %v1283, 8388608
    %v1285 = vsub.s32 0, %v1284
    %v1286 = vadd.s32 %v1281, 1
    %vm1287 = vcmp.gt.s32.totalorder %v1286, 0
    %v1288 = vsel %vm1287, %v1286, 0
    %v1289 = vshrl.u32 %v1288, 5
    %v1290 = vand.u32 %v1288, 31
    %v1291 = vsub.s32 32, %v1290
    %v1292 = vshrl.u32 683565275, %v1291
    %v1293 = vshll.u32 683565275, %v1290
    %v1294 = vshrl.u32 2475754826, %v1291
    %v1295 = vor.u32 %v1293, %v1294
    %v1296 = vshll.u32 2475754826, %v1290
    %v1297 = vshrl.u32 2131351028, %v1291
    %v1298 = vor.u32 %v1296, %v1297
    %v1299 = vshll.u32 2131351028, %v1290
    %v1300 = vshrl.u32 2102212464, %v1291
    %v1301 = vor.u32 %v1299, %v1300
    %v1302 = vshll.u32 2102212464, %v1290
    %v1303 = vshrl.u32 920167782, %v1291
    %v1304 = vor.u32 %v1302, %v1303
    %v1305 = vshll.u32 920167782, %v1290
    %v1306 = vshrl.u32 1326507024, %v1291
    %v1307 = vor.u32 %v1305, %v1306
    %vm1308 = vcmp.lt.s32.totalorder %v1289, 1
    %vm1309 = vcmp.lt.s32.totalorder %v1289, 2
    %vm1310 = vcmp.lt.s32.totalorder %v1289, 3
    %vm1311 = vcmp.lt.s32.totalorder %v1289, 4
    %v1312 = vsel %vm1308, %v1292, %v1295
    %v1313 = vsel %vm1311, %v1301, 2102212464
    %v1314 = vsel %vm1310, %v1298, %v1313
    %v1315 = vsel %vm1309, %v1312, %v1314
    %v1316 = vsel %vm1308, %v1295, %v1298
    %v1317 = vsel %vm1311, %v1304, 920167782
    %v1318 = vsel %vm1310, %v1301, %v1317
    %v1319 = vsel %vm1309, %v1316, %v1318
    %v1320 = vsel %vm1308, %v1298, %v1301
    %v1321 = vsel %vm1311, %v1307, 1326507024
    %v1322 = vsel %vm1310, %v1304, %v1321
    %v1323 = vsel %vm1309, %v1320, %v1322
    %v1324 = vshll.u32 %v1284, 8
    %v1325 = vmul.u32.u64.compose %v1324, %v1323
    %v1326 = vextract.low.u32 %v1325
    %v1327 = vextract.high.u32 %v1325
    %v1328 = vmul.u32.u64.compose %v1324, %v1319
    %v1329 = vextract.low.u32 %v1328
    %v1330 = vextract.high.u32 %v1328
    %v1331 = vmul.u32 %v1324, %v1315
    %v1332 = vadd.s32 %v1327, %v1329
    %vm1333 = vc.u32 %v1327, %v1329
    %v1334 = vadd.s32 %v1330, 1
    %v1335 = vsel %vm1333, %v1334, %v1330
    %v1336 = vadd.s32 %v1331, %v1335
    %v1337 = vadd.s32 %v1336, 536870912
    %v1338 = vshrl.u32 %v1337, 30
    %v1339 = vshll.u32 %v1338, 30
    %v1340 = vsub.s32 %v1336, %v1339
    %vm1341 = vcmp.lt.s32.totalorder %v1340, 0
    %v1342 = vsub.s32 0, %v1340
    %v1343 = vsel %vm1341, %v1342, %v1340
    %v1344 = vclz %v1343
    %v1345 = vsub.s32 %v1344, 2
    %vm1346 = vcmp.gt.s32.totalorder 0, %v1345
    %v1347 = vsel %vm1346, 0, %v1345
    %v1348 = vsub.s32 32, %v1347
    %v1349 = vshll.u32 %v1340, %v1347
    %v1350 = vshrl.u32 %v1332, %v1348
    %v1351 = vor.u32 %v1349, %v1350
    %v1352 = vsub.s32 4294967266, %v1347
    %v1353 = vadd.s32 %v1352, 127
    %v1354 = vshll.u32 %v1353, 23
    %v1355 = vor.u32 4788187, %v1354
    %v1356 = vand.u32 2147483647, %v1355
    %v1358 = vcvt.s32.f32 %v1351
    %v1359 = vmul.f32 %v1358, %v1356
    %v1360 = vxor.u32 %v1359, 2147483648
    %v1361 = vsel %vm1278, %v1360, %v1359
    %v1362 = vsub.s32 4, %v1338
    %v1363 = vsel %vm1278, %v1362, %v1338
    %v1364 = vsel %vm1277, %v325, %v1361
    %v1365 = vsel %vm1277, 0, %v1363
    %v1366 = vcosq.f32.pop %v1364
    %v1367 = vsinq.f32.pop %v1364
    %vm1368 = vweird.f32 %v325
    %v1369 = vadd.s32 %v1365, 3
    %v1370 = vand.u32 %v1369, 3
    %vm1371 = vcmp.lt.s32.totalorder %v1370, 2
    %vm1372 = vcmp.eq.s32.totalorder %v1370, 0
    %v1373 = vxor.u32 %v1367, 2147483648
    %v1374 = vsel %vm1372, %v1366, %v1373
    %vm1375 = vcmp.eq.s32.totalorder %v1370, 2
    %v1376 = vxor.u32 %v1366, 2147483648
    %v1377 = vsel %vm1375, %v1376, %v1367
    %v1378 = vsel %vm1371, %v1374, %v1377
    %v1379 = vsel %vm1368, nan, %v1378
    %v1380 = vand.u32 2147483647, %v326
    %vm1381 = vcmp.le.f32.partialorder %v1380, 0.7853982
    %vm1382 = vcmp.lt.s32.totalorder %v326, 0
    %v1383 = vand.u32 %v326, 2139095040
    %v1384 = vshrl.u32 %v1383, 23
    %v1385 = vsub.s32 %v1384, 127
    %v1386 = vand.u32 2147483647, %v326
    %v1387 = vand.u32 %v1386, 8388607
    %v1388 = vor.u32 %v1387, 8388608
    %v1389 = vsub.s32 0, %v1388
    %v1390 = vadd.s32 %v1385, 1
    %vm1391 = vcmp.gt.s32.totalorder %v1390, 0
    %v1392 = vsel %vm1391, %v1390, 0
    %v1393 = vshrl.u32 %v1392, 5
    %v1394 = vand.u32 %v1392, 31
    %v1395 = vsub.s32 32, %v1394
    %v1396 = vshrl.u32 683565275, %v1395
    %v1397 = vshll.u32 683565275, %v1394
    %v1398 = vshrl.u32 2475754826, %v1395
    %v1399 = vor.u32 %v1397, %v1398
    %v1400 = vshll.u32 2475754826, %v1394
    %v1401 = vshrl.u32 2131351028, %v1395
    %v1402 = vor.u32 %v1400, %v1401
    %v1403 = vshll.u32 2131351028, %v1394
    %v1404 = vshrl.u32 2102212464, %v1395
    %v1405 = vor.u32 %v1403, %v1404
    %v1406 = vshll.u32 2102212464, %v1394
    %v1407 = vshrl.u32 920167782, %v1395
    %v1408 = vor.u32 %v1406, %v1407
    %v1409 = vshll.u32 920167782, %v1394
    %v1410 = vshrl.u32 1326507024, %v1395
    %v1411 = vor.u32 %v1409, %v1410
    %vm1412 = vcmp.lt.s32.totalorder %v1393, 1
    %vm1413 = vcmp.lt.s32.totalorder %v1393, 2
    %vm1414 = vcmp.lt.s32.totalorder %v1393, 3
    %vm1415 = vcmp.lt.s32.totalorder %v1393, 4
    %v1416 = vsel %vm1412, %v1396, %v1399
    %v1417 = vsel %vm1415, %v1405, 2102212464
    %v1418 = vsel %vm1414, %v1402, %v1417
    %v1419 = vsel %vm1413, %v1416, %v1418
    %v1420 = vsel %vm1412, %v1399, %v1402
    %v1421 = vsel %vm1415, %v1408, 920167782
    %v1422 = vsel %vm1414, %v1405, %v1421
    %v1423 = vsel %vm1413, %v1420, %v1422
    %v1424 = vsel %vm1412, %v1402, %v1405
    %v1425 = vsel %vm1415, %v1411, 1326507024
    %v1426 = vsel %vm1414, %v1408, %v1425
    %v1427 = vsel %vm1413, %v1424, %v1426
    %v1428 = vshll.u32 %v1388, 8
    %v1429 = vmul.u32.u64.compose %v1428, %v1427
    %v1430 = vextract.low.u32 %v1429
    %v1431 = vextract.high.u32 %v1429
    %v1432 = vmul.u32.u64.compose %v1428, %v1423
    %v1433 = vextract.low.u32 %v1432
    %v1434 = vextract.high.u32 %v1432
    %v1435 = vmul.u32 %v1428, %v1419
    %v1436 = vadd.s32 %v1431, %v1433
    %vm1437 = vc.u32 %v1431, %v1433
    %v1438 = vadd.s32 %v1434, 1
    %v1439 = vsel %vm1437, %v1438, %v1434
    %v1440 = vadd.s32 %v1435, %v1439
    %v1441 = vadd.s32 %v1440, 536870912
    %v1442 = vshrl.u32 %v1441, 30
    %v1443 = vshll.u32 %v1442, 30
    %v1444 = vsub.s32 %v1440, %v1443
    %vm1445 = vcmp.lt.s32.totalorder %v1444, 0
    %v1446 = vsub.s32 0, %v1444
    %v1447 = vsel %vm1445, %v1446, %v1444
    %v1448 = vclz %v1447
    %v1449 = vsub.s32 %v1448, 2
    %vm1450 = vcmp.gt.s32.totalorder 0, %v1449
    %v1451 = vsel %vm1450, 0, %v1449
    %v1452 = vsub.s32 32, %v1451
    %v1453 = vshll.u32 %v1444, %v1451
    %v1454 = vshrl.u32 %v1436, %v1452
    %v1455 = vor.u32 %v1453, %v1454
    %v1456 = vsub.s32 4294967266, %v1451
    %v1457 = vadd.s32 %v1456, 127
    %v1458 = vshll.u32 %v1457, 23
    %v1459 = vor.u32 4788187, %v1458
    %v1460 = vand.u32 2147483647, %v1459
    %v1462 = vcvt.s32.f32 %v1455
    %v1463 = vmul.f32 %v1462, %v1460
    %v1464 = vxor.u32 %v1463, 2147483648
    %v1465 = vsel %vm1382, %v1464, %v1463
    %v1466 = vsub.s32 4, %v1442
    %v1467 = vsel %vm1382, %v1466, %v1442
    %v1468 = vsel %vm1381, %v326, %v1465
    %v1469 = vsel %vm1381, 0, %v1467
    %v1470 = vcosq.f32.pop %v1468
    %v1471 = vsinq.f32.pop %v1468
    %vm1472 = vweird.f32 %v326
    %v1473 = vadd.s32 %v1469, 3
    %v1474 = vand.u32 %v1473, 3
    %vm1475 = vcmp.lt.s32.totalorder %v1474, 2
    %vm1476 = vcmp.eq.s32.totalorder %v1474, 0
    %v1477 = vxor.u32 %v1471, 2147483648
    %v1478 = vsel %vm1476, %v1470, %v1477
    %vm1479 = vcmp.eq.s32.totalorder %v1474, 2
    %v1480 = vxor.u32 %v1470, 2147483648
    %v1481 = vsel %vm1479, %v1480, %v1471
    %v1482 = vsel %vm1475, %v1478, %v1481
    %v1483 = vsel %vm1472, nan, %v1482
    %v1484 = vand.u32 2147483647, %v327
    %vm1485 = vcmp.le.f32.partialorder %v1484, 0.7853982
    %vm1486 = vcmp.lt.s32.totalorder %v327, 0
    %v1487 = vand.u32 %v327, 2139095040
    %v1488 = vshrl.u32 %v1487, 23
    %v1489 = vsub.s32 %v1488, 127
    %v1490 = vand.u32 2147483647, %v327
    %v1491 = vand.u32 %v1490, 8388607
    %v1492 = vor.u32 %v1491, 8388608
    %v1493 = vsub.s32 0, %v1492
    %v1494 = vadd.s32 %v1489, 1
    %vm1495 = vcmp.gt.s32.totalorder %v1494, 0
    %v1496 = vsel %vm1495, %v1494, 0
    %v1497 = vshrl.u32 %v1496, 5
    %v1498 = vand.u32 %v1496, 31
    %v1499 = vsub.s32 32, %v1498
    %v1500 = vshrl.u32 683565275, %v1499
    %v1501 = vshll.u32 683565275, %v1498
    %v1502 = vshrl.u32 2475754826, %v1499
    %v1503 = vor.u32 %v1501, %v1502
    %v1504 = vshll.u32 2475754826, %v1498
    %v1505 = vshrl.u32 2131351028, %v1499
    %v1506 = vor.u32 %v1504, %v1505
    %v1507 = vshll.u32 2131351028, %v1498
    %v1508 = vshrl.u32 2102212464, %v1499
    %v1509 = vor.u32 %v1507, %v1508
    %v1510 = vshll.u32 2102212464, %v1498
    %v1511 = vshrl.u32 920167782, %v1499
    %v1512 = vor.u32 %v1510, %v1511
    %v1513 = vshll.u32 920167782, %v1498
    %v1514 = vshrl.u32 1326507024, %v1499
    %v1515 = vor.u32 %v1513, %v1514
    %vm1516 = vcmp.lt.s32.totalorder %v1497, 1
    %vm1517 = vcmp.lt.s32.totalorder %v1497, 2
    %vm1518 = vcmp.lt.s32.totalorder %v1497, 3
    %vm1519 = vcmp.lt.s32.totalorder %v1497, 4
    %v1520 = vsel %vm1516, %v1500, %v1503
    %v1521 = vsel %vm1519, %v1509, 2102212464
    %v1522 = vsel %vm1518, %v1506, %v1521
    %v1523 = vsel %vm1517, %v1520, %v1522
    %v1524 = vsel %vm1516, %v1503, %v1506
    %v1525 = vsel %vm1519, %v1512, 920167782
    %v1526 = vsel %vm1518, %v1509, %v1525
    %v1527 = vsel %vm1517, %v1524, %v1526
    %v1528 = vsel %vm1516, %v1506, %v1509
    %v1529 = vsel %vm1519, %v1515, 1326507024
    %v1530 = vsel %vm1518, %v1512, %v1529
    %v1531 = vsel %vm1517, %v1528, %v1530
    %v1532 = vshll.u32 %v1492, 8
    %v1533 = vmul.u32.u64.compose %v1532, %v1531
    %v1534 = vextract.low.u32 %v1533
    %v1535 = vextract.high.u32 %v1533
    %v1536 = vmul.u32.u64.compose %v1532, %v1527
    %v1537 = vextract.low.u32 %v1536
    %v1538 = vextract.high.u32 %v1536
    %v1539 = vmul.u32 %v1532, %v1523
    %v1540 = vadd.s32 %v1535, %v1537
    %vm1541 = vc.u32 %v1535, %v1537
    %v1542 = vadd.s32 %v1538, 1
    %v1543 = vsel %vm1541, %v1542, %v1538
    %v1544 = vadd.s32 %v1539, %v1543
    %v1545 = vadd.s32 %v1544, 536870912
    %v1546 = vshrl.u32 %v1545, 30
    %v1547 = vshll.u32 %v1546, 30
    %v1548 = vsub.s32 %v1544, %v1547
    %vm1549 = vcmp.lt.s32.totalorder %v1548, 0
    %v1550 = vsub.s32 0, %v1548
    %v1551 = vsel %vm1549, %v1550, %v1548
    %v1552 = vclz %v1551
    %v1553 = vsub.s32 %v1552, 2
    %vm1554 = vcmp.gt.s32.totalorder 0, %v1553
    %v1555 = vsel %vm1554, 0, %v1553
    %v1556 = vsub.s32 32, %v1555
    %v1557 = vshll.u32 %v1548, %v1555
    %v1558 = vshrl.u32 %v1540, %v1556
    %v1559 = vor.u32 %v1557, %v1558
    %v1560 = vsub.s32 4294967266, %v1555
    %v1561 = vadd.s32 %v1560, 127
    %v1562 = vshll.u32 %v1561, 23
    %v1563 = vor.u32 4788187, %v1562
    %v1564 = vand.u32 2147483647, %v1563
    %v1566 = vcvt.s32.f32 %v1559
    %v1567 = vmul.f32 %v1566, %v1564
    %v1568 = vxor.u32 %v1567, 2147483648
    %v1569 = vsel %vm1486, %v1568, %v1567
    %v1570 = vsub.s32 4, %v1546
    %v1571 = vsel %vm1486, %v1570, %v1546
    %v1572 = vsel %vm1485, %v327, %v1569
    %v1573 = vsel %vm1485, 0, %v1571
    %v1574 = vcosq.f32.pop %v1572
    %v1575 = vsinq.f32.pop %v1572
    %vm1576 = vweird.f32 %v327
    %v1577 = vadd.s32 %v1573, 3
    %v1578 = vand.u32 %v1577, 3
    %vm1579 = vcmp.lt.s32.totalorder %v1578, 2
    %vm1580 = vcmp.eq.s32.totalorder %v1578, 0
    %v1581 = vxor.u32 %v1575, 2147483648
    %v1582 = vsel %vm1580, %v1574, %v1581
    %vm1583 = vcmp.eq.s32.totalorder %v1578, 2
    %v1584 = vxor.u32 %v1574, 2147483648
    %v1585 = vsel %vm1583, %v1584, %v1575
    %v1586 = vsel %vm1579, %v1582, %v1585
    %v1587 = vsel %vm1576, nan, %v1586
    %v1588 = vand.u32 2147483647, %v328
    %vm1589 = vcmp.le.f32.partialorder %v1588, 0.7853982
    %vm1590 = vcmp.lt.s32.totalorder %v328, 0
    %v1591 = vand.u32 %v328, 2139095040
    %v1592 = vshrl.u32 %v1591, 23
    %v1593 = vsub.s32 %v1592, 127
    %v1594 = vand.u32 2147483647, %v328
    %v1595 = vand.u32 %v1594, 8388607
    %v1596 = vor.u32 %v1595, 8388608
    %v1597 = vsub.s32 0, %v1596
    %v1598 = vadd.s32 %v1593, 1
    %vm1599 = vcmp.gt.s32.totalorder %v1598, 0
    %v1600 = vsel %vm1599, %v1598, 0
    %v1601 = vshrl.u32 %v1600, 5
    %v1602 = vand.u32 %v1600, 31
    %v1603 = vsub.s32 32, %v1602
    %v1604 = vshrl.u32 683565275, %v1603
    %v1605 = vshll.u32 683565275, %v1602
    %v1606 = vshrl.u32 2475754826, %v1603
    %v1607 = vor.u32 %v1605, %v1606
    %v1608 = vshll.u32 2475754826, %v1602
    %v1609 = vshrl.u32 2131351028, %v1603
    %v1610 = vor.u32 %v1608, %v1609
    %v1611 = vshll.u32 2131351028, %v1602
    %v1612 = vshrl.u32 2102212464, %v1603
    %v1613 = vor.u32 %v1611, %v1612
    %v1614 = vshll.u32 2102212464, %v1602
    %v1615 = vshrl.u32 920167782, %v1603
    %v1616 = vor.u32 %v1614, %v1615
    %v1617 = vshll.u32 920167782, %v1602
    %v1618 = vshrl.u32 1326507024, %v1603
    %v1619 = vor.u32 %v1617, %v1618
    %vm1620 = vcmp.lt.s32.totalorder %v1601, 1
    %vm1621 = vcmp.lt.s32.totalorder %v1601, 2
    %vm1622 = vcmp.lt.s32.totalorder %v1601, 3
    %vm1623 = vcmp.lt.s32.totalorder %v1601, 4
    %v1624 = vsel %vm1620, %v1604, %v1607
    %v1625 = vsel %vm1623, %v1613, 2102212464
    %v1626 = vsel %vm1622, %v1610, %v1625
    %v1627 = vsel %vm1621, %v1624, %v1626
    %v1628 = vsel %vm1620, %v1607, %v1610
    %v1629 = vsel %vm1623, %v1616, 920167782
    %v1630 = vsel %vm1622, %v1613, %v1629
    %v1631 = vsel %vm1621, %v1628, %v1630
    %v1632 = vsel %vm1620, %v1610, %v1613
    %v1633 = vsel %vm1623, %v1619, 1326507024
    %v1634 = vsel %vm1622, %v1616, %v1633
    %v1635 = vsel %vm1621, %v1632, %v1634
    %v1636 = vshll.u32 %v1596, 8
    %v1637 = vmul.u32.u64.compose %v1636, %v1635
    %v1638 = vextract.low.u32 %v1637
    %v1639 = vextract.high.u32 %v1637
    %v1640 = vmul.u32.u64.compose %v1636, %v1631
    %v1641 = vextract.low.u32 %v1640
    %v1642 = vextract.high.u32 %v1640
    %v1643 = vmul.u32 %v1636, %v1627
    %v1644 = vadd.s32 %v1639, %v1641
    %vm1645 = vc.u32 %v1639, %v1641
    %v1646 = vadd.s32 %v1642, 1
    %v1647 = vsel %vm1645, %v1646, %v1642
    %v1648 = vadd.s32 %v1643, %v1647
    %v1649 = vadd.s32 %v1648, 536870912
    %v1650 = vshrl.u32 %v1649, 30
    %v1651 = vshll.u32 %v1650, 30
    %v1652 = vsub.s32 %v1648, %v1651
    %vm1653 = vcmp.lt.s32.totalorder %v1652, 0
    %v1654 = vsub.s32 0, %v1652
    %v1655 = vsel %vm1653, %v1654, %v1652
    %v1656 = vclz %v1655
    %v1657 = vsub.s32 %v1656, 2
    %vm1658 = vcmp.gt.s32.totalorder 0, %v1657
    %v1659 = vsel %vm1658, 0, %v1657
    %v1660 = vsub.s32 32, %v1659
    %v1661 = vshll.u32 %v1652, %v1659
    %v1662 = vshrl.u32 %v1644, %v1660
    %v1663 = vor.u32 %v1661, %v1662
    %v1664 = vsub.s32 4294967266, %v1659
    %v1665 = vadd.s32 %v1664, 127
    %v1666 = vshll.u32 %v1665, 23
    %v1667 = vor.u32 4788187, %v1666
    %v1668 = vand.u32 2147483647, %v1667
    %v1670 = vcvt.s32.f32 %v1663
    %v1671 = vmul.f32 %v1670, %v1668
    %v1672 = vxor.u32 %v1671, 2147483648
    %v1673 = vsel %vm1590, %v1672, %v1671
    %v1674 = vsub.s32 4, %v1650
    %v1675 = vsel %vm1590, %v1674, %v1650
    %v1676 = vsel %vm1589, %v328, %v1673
    %v1677 = vsel %vm1589, 0, %v1675
    %v1678 = vcosq.f32.pop %v1676
    %v1679 = vsinq.f32.pop %v1676
    %vm1680 = vweird.f32 %v328
    %v1681 = vadd.s32 %v1677, 3
    %v1682 = vand.u32 %v1681, 3
    %vm1683 = vcmp.lt.s32.totalorder %v1682, 2
    %vm1684 = vcmp.eq.s32.totalorder %v1682, 0
    %v1685 = vxor.u32 %v1679, 2147483648
    %v1686 = vsel %vm1684, %v1678, %v1685
    %vm1687 = vcmp.eq.s32.totalorder %v1682, 2
    %v1688 = vxor.u32 %v1678, 2147483648
    %v1689 = vsel %vm1687, %v1688, %v1679
    %v1690 = vsel %vm1683, %v1686, %v1689
    %v1691 = vsel %vm1680, nan, %v1690
    %v1692 = vand.u32 2147483647, %v329
    %vm1693 = vcmp.le.f32.partialorder %v1692, 0.7853982
    %vm1694 = vcmp.lt.s32.totalorder %v329, 0
    %v1695 = vand.u32 %v329, 2139095040
    %v1696 = vshrl.u32 %v1695, 23
    %v1697 = vsub.s32 %v1696, 127
    %v1698 = vand.u32 2147483647, %v329
    %v1699 = vand.u32 %v1698, 8388607
    %v1700 = vor.u32 %v1699, 8388608
    %v1701 = vsub.s32 0, %v1700
    %v1702 = vadd.s32 %v1697, 1
    %vm1703 = vcmp.gt.s32.totalorder %v1702, 0
    %v1704 = vsel %vm1703, %v1702, 0
    %v1705 = vshrl.u32 %v1704, 5
    %v1706 = vand.u32 %v1704, 31
    %v1707 = vsub.s32 32, %v1706
    %v1708 = vshrl.u32 683565275, %v1707
    %v1709 = vshll.u32 683565275, %v1706
    %v1710 = vshrl.u32 2475754826, %v1707
    %v1711 = vor.u32 %v1709, %v1710
    %v1712 = vshll.u32 2475754826, %v1706
    %v1713 = vshrl.u32 2131351028, %v1707
    %v1714 = vor.u32 %v1712, %v1713
    %v1715 = vshll.u32 2131351028, %v1706
    %v1716 = vshrl.u32 2102212464, %v1707
    %v1717 = vor.u32 %v1715, %v1716
    %v1718 = vshll.u32 2102212464, %v1706
    %v1719 = vshrl.u32 920167782, %v1707
    %v1720 = vor.u32 %v1718, %v1719
    %v1721 = vshll.u32 920167782, %v1706
    %v1722 = vshrl.u32 1326507024, %v1707
    %v1723 = vor.u32 %v1721, %v1722
    %vm1724 = vcmp.lt.s32.totalorder %v1705, 1
    %vm1725 = vcmp.lt.s32.totalorder %v1705, 2
    %vm1726 = vcmp.lt.s32.totalorder %v1705, 3
    %vm1727 = vcmp.lt.s32.totalorder %v1705, 4
    %v1728 = vsel %vm1724, %v1708, %v1711
    %v1729 = vsel %vm1727, %v1717, 2102212464
    %v1730 = vsel %vm1726, %v1714, %v1729
    %v1731 = vsel %vm1725, %v1728, %v1730
    %v1732 = vsel %vm1724, %v1711, %v1714
    %v1733 = vsel %vm1727, %v1720, 920167782
    %v1734 = vsel %vm1726, %v1717, %v1733
    %v1735 = vsel %vm1725, %v1732, %v1734
    %v1736 = vsel %vm1724, %v1714, %v1717
    %v1737 = vsel %vm1727, %v1723, 1326507024
    %v1738 = vsel %vm1726, %v1720, %v1737
    %v1739 = vsel %vm1725, %v1736, %v1738
    %v1740 = vshll.u32 %v1700, 8
    %v1741 = vmul.u32.u64.compose %v1740, %v1739
    %v1742 = vextract.low.u32 %v1741
    %v1743 = vextract.high.u32 %v1741
    %v1744 = vmul.u32.u64.compose %v1740, %v1735
    %v1745 = vextract.low.u32 %v1744
    %v1746 = vextract.high.u32 %v1744
    %v1747 = vmul.u32 %v1740, %v1731
    %v1748 = vadd.s32 %v1743, %v1745
    %vm1749 = vc.u32 %v1743, %v1745
    %v1750 = vadd.s32 %v1746, 1
    %v1751 = vsel %vm1749, %v1750, %v1746
    %v1752 = vadd.s32 %v1747, %v1751
    %v1753 = vadd.s32 %v1752, 536870912
    %v1754 = vshrl.u32 %v1753, 30
    %v1755 = vshll.u32 %v1754, 30
    %v1756 = vsub.s32 %v1752, %v1755
    %vm1757 = vcmp.lt.s32.totalorder %v1756, 0
    %v1758 = vsub.s32 0, %v1756
    %v1759 = vsel %vm1757, %v1758, %v1756
    %v1760 = vclz %v1759
    %v1761 = vsub.s32 %v1760, 2
    %vm1762 = vcmp.gt.s32.totalorder 0, %v1761
    %v1763 = vsel %vm1762, 0, %v1761
    %v1764 = vsub.s32 32, %v1763
    %v1765 = vshll.u32 %v1756, %v1763
    %v1766 = vshrl.u32 %v1748, %v1764
    %v1767 = vor.u32 %v1765, %v1766
    %v1768 = vsub.s32 4294967266, %v1763
    %v1769 = vadd.s32 %v1768, 127
    %v1770 = vshll.u32 %v1769, 23
    %v1771 = vor.u32 4788187, %v1770
    %v1772 = vand.u32 2147483647, %v1771
    %v1774 = vcvt.s32.f32 %v1767
    %v1775 = vmul.f32 %v1774, %v1772
    %v1776 = vxor.u32 %v1775, 2147483648
    %v1777 = vsel %vm1694, %v1776, %v1775
    %v1778 = vsub.s32 4, %v1754
    %v1779 = vsel %vm1694, %v1778, %v1754
    %v1780 = vsel %vm1693, %v329, %v1777
    %v1781 = vsel %vm1693, 0, %v1779
    %v1782 = vcosq.f32.pop %v1780
    %v1783 = vsinq.f32.pop %v1780
    %vm1784 = vweird.f32 %v329
    %v1785 = vadd.s32 %v1781, 3
    %v1786 = vand.u32 %v1785, 3
    %vm1787 = vcmp.lt.s32.totalorder %v1786, 2
    %vm1788 = vcmp.eq.s32.totalorder %v1786, 0
    %v1789 = vxor.u32 %v1783, 2147483648
    %v1790 = vsel %vm1788, %v1782, %v1789
    %vm1791 = vcmp.eq.s32.totalorder %v1786, 2
    %v1792 = vxor.u32 %v1782, 2147483648
    %v1793 = vsel %vm1791, %v1792, %v1783
    %v1794 = vsel %vm1787, %v1790, %v1793
    %v1795 = vsel %vm1784, nan, %v1794
    %v1796 = vand.u32 2147483647, %v330
    %vm1797 = vcmp.le.f32.partialorder %v1796, 0.7853982
    %vm1798 = vcmp.lt.s32.totalorder %v330, 0
    %v1799 = vand.u32 %v330, 2139095040
    %v1800 = vshrl.u32 %v1799, 23
    %v1801 = vsub.s32 %v1800, 127
    %v1802 = vand.u32 2147483647, %v330
    %v1803 = vand.u32 %v1802, 8388607
    %v1804 = vor.u32 %v1803, 8388608
    %v1805 = vsub.s32 0, %v1804
    %v1806 = vadd.s32 %v1801, 1
    %vm1807 = vcmp.gt.s32.totalorder %v1806, 0
    %v1808 = vsel %vm1807, %v1806, 0
    %v1809 = vshrl.u32 %v1808, 5
    %v1810 = vand.u32 %v1808, 31
    %v1811 = vsub.s32 32, %v1810
    %v1812 = vshrl.u32 683565275, %v1811
    %v1813 = vshll.u32 683565275, %v1810
    %v1814 = vshrl.u32 2475754826, %v1811
    %v1815 = vor.u32 %v1813, %v1814
    %v1816 = vshll.u32 2475754826, %v1810
    %v1817 = vshrl.u32 2131351028, %v1811
    %v1818 = vor.u32 %v1816, %v1817
    %v1819 = vshll.u32 2131351028, %v1810
    %v1820 = vshrl.u32 2102212464, %v1811
    %v1821 = vor.u32 %v1819, %v1820
    %v1822 = vshll.u32 2102212464, %v1810
    %v1823 = vshrl.u32 920167782, %v1811
    %v1824 = vor.u32 %v1822, %v1823
    %v1825 = vshll.u32 920167782, %v1810
    %v1826 = vshrl.u32 1326507024, %v1811
    %v1827 = vor.u32 %v1825, %v1826
    %vm1828 = vcmp.lt.s32.totalorder %v1809, 1
    %vm1829 = vcmp.lt.s32.totalorder %v1809, 2
    %vm1830 = vcmp.lt.s32.totalorder %v1809, 3
    %vm1831 = vcmp.lt.s32.totalorder %v1809, 4
    %v1832 = vsel %vm1828, %v1812, %v1815
    %v1833 = vsel %vm1831, %v1821, 2102212464
    %v1834 = vsel %vm1830, %v1818, %v1833
    %v1835 = vsel %vm1829, %v1832, %v1834
    %v1836 = vsel %vm1828, %v1815, %v1818
    %v1837 = vsel %vm1831, %v1824, 920167782
    %v1838 = vsel %vm1830, %v1821, %v1837
    %v1839 = vsel %vm1829, %v1836, %v1838
    %v1840 = vsel %vm1828, %v1818, %v1821
    %v1841 = vsel %vm1831, %v1827, 1326507024
    %v1842 = vsel %vm1830, %v1824, %v1841
    %v1843 = vsel %vm1829, %v1840, %v1842
    %v1844 = vshll.u32 %v1804, 8
    %v1845 = vmul.u32.u64.compose %v1844, %v1843
    %v1846 = vextract.low.u32 %v1845
    %v1847 = vextract.high.u32 %v1845
    %v1848 = vmul.u32.u64.compose %v1844, %v1839
    %v1849 = vextract.low.u32 %v1848
    %v1850 = vextract.high.u32 %v1848
    %v1851 = vmul.u32 %v1844, %v1835
    %v1852 = vadd.s32 %v1847, %v1849
    %vm1853 = vc.u32 %v1847, %v1849
    %v1854 = vadd.s32 %v1850, 1
    %v1855 = vsel %vm1853, %v1854, %v1850
    %v1856 = vadd.s32 %v1851, %v1855
    %v1857 = vadd.s32 %v1856, 536870912
    %v1858 = vshrl.u32 %v1857, 30
    %v1859 = vshll.u32 %v1858, 30
    %v1860 = vsub.s32 %v1856, %v1859
    %vm1861 = vcmp.lt.s32.totalorder %v1860, 0
    %v1862 = vsub.s32 0, %v1860
    %v1863 = vsel %vm1861, %v1862, %v1860
    %v1864 = vclz %v1863
    %v1865 = vsub.s32 %v1864, 2
    %vm1866 = vcmp.gt.s32.totalorder 0, %v1865
    %v1867 = vsel %vm1866, 0, %v1865
    %v1868 = vsub.s32 32, %v1867
    %v1869 = vshll.u32 %v1860, %v1867
    %v1870 = vshrl.u32 %v1852, %v1868
    %v1871 = vor.u32 %v1869, %v1870
    %v1872 = vsub.s32 4294967266, %v1867
    %v1873 = vadd.s32 %v1872, 127
    %v1874 = vshll.u32 %v1873, 23
    %v1875 = vor.u32 4788187, %v1874
    %v1876 = vand.u32 2147483647, %v1875
    %v1878 = vcvt.s32.f32 %v1871
    %v1879 = vmul.f32 %v1878, %v1876
    %v1880 = vxor.u32 %v1879, 2147483648
    %v1881 = vsel %vm1798, %v1880, %v1879
    %v1882 = vsub.s32 4, %v1858
    %v1883 = vsel %vm1798, %v1882, %v1858
    %v1884 = vsel %vm1797, %v330, %v1881
    %v1885 = vsel %vm1797, 0, %v1883
    %v1886 = vcosq.f32.pop %v1884
    %v1887 = vsinq.f32.pop %v1884
    %vm1888 = vweird.f32 %v330
    %v1889 = vadd.s32 %v1885, 3
    %v1890 = vand.u32 %v1889, 3
    %vm1891 = vcmp.lt.s32.totalorder %v1890, 2
    %vm1892 = vcmp.eq.s32.totalorder %v1890, 0
    %v1893 = vxor.u32 %v1887, 2147483648
    %v1894 = vsel %vm1892, %v1886, %v1893
    %vm1895 = vcmp.eq.s32.totalorder %v1890, 2
    %v1896 = vxor.u32 %v1886, 2147483648
    %v1897 = vsel %vm1895, %v1896, %v1887
    %v1898 = vsel %vm1891, %v1894, %v1897
    %v1899 = vsel %vm1888, nan, %v1898
    %v1900 = vand.u32 2147483647, %v331
    %vm1901 = vcmp.le.f32.partialorder %v1900, 0.7853982
    %vm1902 = vcmp.lt.s32.totalorder %v331, 0
    %v1903 = vand.u32 %v331, 2139095040
    %v1904 = vshrl.u32 %v1903, 23
    %v1905 = vsub.s32 %v1904, 127
    %v1906 = vand.u32 2147483647, %v331
    %v1907 = vand.u32 %v1906, 8388607
    %v1908 = vor.u32 %v1907, 8388608
    %v1909 = vsub.s32 0, %v1908
    %v1910 = vadd.s32 %v1905, 1
    %vm1911 = vcmp.gt.s32.totalorder %v1910, 0
    %v1912 = vsel %vm1911, %v1910, 0
    %v1913 = vshrl.u32 %v1912, 5
    %v1914 = vand.u32 %v1912, 31
    %v1915 = vsub.s32 32, %v1914
    %v1916 = vshrl.u32 683565275, %v1915
    %v1917 = vshll.u32 683565275, %v1914
    %v1918 = vshrl.u32 2475754826, %v1915
    %v1919 = vor.u32 %v1917, %v1918
    %v1920 = vshll.u32 2475754826, %v1914
    %v1921 = vshrl.u32 2131351028, %v1915
    %v1922 = vor.u32 %v1920, %v1921
    %v1923 = vshll.u32 2131351028, %v1914
    %v1924 = vshrl.u32 2102212464, %v1915
    %v1925 = vor.u32 %v1923, %v1924
    %v1926 = vshll.u32 2102212464, %v1914
    %v1927 = vshrl.u32 920167782, %v1915
    %v1928 = vor.u32 %v1926, %v1927
    %v1929 = vshll.u32 920167782, %v1914
    %v1930 = vshrl.u32 1326507024, %v1915
    %v1931 = vor.u32 %v1929, %v1930
    %vm1932 = vcmp.lt.s32.totalorder %v1913, 1
    %vm1933 = vcmp.lt.s32.totalorder %v1913, 2
    %vm1934 = vcmp.lt.s32.totalorder %v1913, 3
    %vm1935 = vcmp.lt.s32.totalorder %v1913, 4
    %v1936 = vsel %vm1932, %v1916, %v1919
    %v1937 = vsel %vm1935, %v1925, 2102212464
    %v1938 = vsel %vm1934, %v1922, %v1937
    %v1939 = vsel %vm1933, %v1936, %v1938
    %v1940 = vsel %vm1932, %v1919, %v1922
    %v1941 = vsel %vm1935, %v1928, 920167782
    %v1942 = vsel %vm1934, %v1925, %v1941
    %v1943 = vsel %vm1933, %v1940, %v1942
    %v1944 = vsel %vm1932, %v1922, %v1925
    %v1945 = vsel %vm1935, %v1931, 1326507024
    %v1946 = vsel %vm1934, %v1928, %v1945
    %v1947 = vsel %vm1933, %v1944, %v1946
    %v1948 = vshll.u32 %v1908, 8
    %v1949 = vmul.u32.u64.compose %v1948, %v1947
    %v1950 = vextract.low.u32 %v1949
    %v1951 = vextract.high.u32 %v1949
    %v1952 = vmul.u32.u64.compose %v1948, %v1943
    %v1953 = vextract.low.u32 %v1952
    %v1954 = vextract.high.u32 %v1952
    %v1955 = vmul.u32 %v1948, %v1939
    %v1956 = vadd.s32 %v1951, %v1953
    %vm1957 = vc.u32 %v1951, %v1953
    %v1958 = vadd.s32 %v1954, 1
    %v1959 = vsel %vm1957, %v1958, %v1954
    %v1960 = vadd.s32 %v1955, %v1959
    %v1961 = vadd.s32 %v1960, 536870912
    %v1962 = vshrl.u32 %v1961, 30
    %v1963 = vshll.u32 %v1962, 30
    %v1964 = vsub.s32 %v1960, %v1963
    %vm1965 = vcmp.lt.s32.totalorder %v1964, 0
    %v1966 = vsub.s32 0, %v1964
    %v1967 = vsel %vm1965, %v1966, %v1964
    %v1968 = vclz %v1967
    %v1969 = vsub.s32 %v1968, 2
    %vm1970 = vcmp.gt.s32.totalorder 0, %v1969
    %v1971 = vsel %vm1970, 0, %v1969
    %v1972 = vsub.s32 32, %v1971
    %v1973 = vshll.u32 %v1964, %v1971
    %v1974 = vshrl.u32 %v1956, %v1972
    %v1975 = vor.u32 %v1973, %v1974
    %v1976 = vsub.s32 4294967266, %v1971
    %v1977 = vadd.s32 %v1976, 127
    %v1978 = vshll.u32 %v1977, 23
    %v1979 = vor.u32 4788187, %v1978
    %v1980 = vand.u32 2147483647, %v1979
    %v1982 = vcvt.s32.f32 %v1975
    %v1983 = vmul.f32 %v1982, %v1980
    %v1984 = vxor.u32 %v1983, 2147483648
    %v1985 = vsel %vm1902, %v1984, %v1983
    %v1986 = vsub.s32 4, %v1962
    %v1987 = vsel %vm1902, %v1986, %v1962
    %v1988 = vsel %vm1901, %v331, %v1985
    %v1989 = vsel %vm1901, 0, %v1987
    %v1990 = vcosq.f32.pop %v1988
    %v1991 = vsinq.f32.pop %v1988
    %vm1992 = vweird.f32 %v331
    %v1993 = vadd.s32 %v1989, 3
    %v1994 = vand.u32 %v1993, 3
    %vm1995 = vcmp.lt.s32.totalorder %v1994, 2
    %vm1996 = vcmp.eq.s32.totalorder %v1994, 0
    %v1997 = vxor.u32 %v1991, 2147483648
    %v1998 = vsel %vm1996, %v1990, %v1997
    %vm1999 = vcmp.eq.s32.totalorder %v1994, 2
    %v2000 = vxor.u32 %v1990, 2147483648
    %v2001 = vsel %vm1999, %v2000, %v1991
    %v2002 = vsel %vm1995, %v1998, %v2001
    %v2003 = vsel %vm1992, nan, %v2002
    %v2004 = vmul.f32 %v274, %v1275
    %v2005 = vmul.f32 %v281, %v1379
    %v2006 = vmul.f32 %v288, %v1483
    %v2007 = vmul.f32 %v295, %v1587
    %v2008 = vmul.f32 %v302, %v1691
    %v2009 = vmul.f32 %v309, %v1795
    %v2010 = vmul.f32 %v316, %v1899
    %v2011 = vmul.f32 %v323, %v2003
    %2012 = vst [vmem:[#allocation3 + $0x40] sm:$0xff] %v2004
    %2013 = vst [vmem:[#allocation3 + $0x48] sm:$0xff] %v2005
    %2014 = vst [vmem:[#allocation3 + $0x50] sm:$0xff] %v2006
    %2015 = vst [vmem:[#allocation3 + $0x58] sm:$0xff] %v2007
    %2016 = vst [vmem:[#allocation3 + $0x60] sm:$0xff] %v2008
    %2017 = vst [vmem:[#allocation3 + $0x68] sm:$0xff] %v2009
    %2018 = vst [vmem:[#allocation3 + $0x70] sm:$0xff] %v2010
    %2019 = vst [vmem:[#allocation3 + $0x78] sm:$0xff] %v2011
    // Predicated region
    $region6: #{tpu_custom_call.1} parent=1 // pred_check
      _
    $region7: #{tpu_custom_call.1} parent=1 // pred_check_branch
      %2021 = sbr.rel (0) target = $region9
    $region8: #{tpu_custom_call.1} parent=1 // pred_region
      %s2023 = ssub.s32 2048, 2048
      %2024 = vsyncadd [#allocation4], %s2023
      %s2025 = sshll.u32 [#allocation3], 4
      %s2026 = int_to_ptr.vmem [resolvable:$true] %s2025
      %2031 = dma.vmem_to_hbm [thread:$0]  %s2026, 2048, %s1, [#allocation4], 1024, 1024, 64
    $region9: #{tpu_custom_call.1} parent=1 // pred_fallthru
      _
    // Predicated region
    $region10: #{tpu_custom_call.1} parent=1 // pred_check
      _
    $region11: #{tpu_custom_call.1} parent=1 // pred_check_branch
      %2033 = sbr.rel (0) target = $region13
    $region12: #{tpu_custom_call.1} parent=1 // pred_region
      %2034 = dma.done [#allocation4], 2048
    $region13: #{tpu_custom_call.1} parent=1 // pred_fallthru
      _
    %2035 = vsyncpa [#allocation4], 1

</llo_original>
